<compile_context>
chip_gen: v6e
topology: v6e:2x2x1
jax: 0.10.0
libtpu: 0.0.40
codegen_flags: <defaults>
</compile_context>

<pallas_src>
import math

import jax
import jax.numpy as jnp
from jax import lax
from jax.experimental import pallas as pl
from jax.experimental.pallas import tpu as pltpu

# ----------------------- small config (LawModel(config)) -----------------------
VOCAB = 64          # config.vocab_size
EMB = 32            # config.word_emb_dim
HID = 32            # config.hidden_size
MLP = 32            # config.mlp_size
LAB = 16            # config.law_label_size
TOPK = 3            # config.topk
NUM_LAYERS = 1      # config.num_layers  (dropout inactive for 1 layer)
BIDIR = False       # config.bidirectional
B, S = 2, 8         # batch, seq_len
PAD_B = 8           # batch rows padded to one full sublane tile
RNN_OUT = HID * (2 if BIDIR else 1)
GATES = 4 * HID


# ------------------------------ fused forward kernel ------------------------------
def fused_law_kernel(ids_ref,                                     # VMEM (S*PAD_B, 1) int32
                     emb_ref, wih_ref, whh_ref, blstm_ref,        # VMEM weights
                     w1_ref, b1_ref, w2_ref, b2_ref, lab_ref,     # VMEM weights/labels
                     loss_ref, tkl_ref, preds_ref):               # outputs
    # ---- embedding pre-folded into the input projection ----
    # table[v, :] = emb[v, :] @ W_ih            -> (VOCAB, 4*HID)
    table = jnp.dot(emb_ref[...], wih_ref[...],
                    preferred_element_type=jnp.float32)

    # one-hot of time-major, 8-row-padded token ids (padding id = -1 -> all zeros)
    onehot = (lax.broadcasted_iota(jnp.int32, (S * PAD_B, VOCAB), 1)
              == ids_ref[...]).astype(jnp.float32)                # (S*8, VOCAB)

    # gates_in for ALL timesteps in one MXU matmul; row block t*8..t*8+8 is the
    # sublane-aligned slab for timestep t.
    gates_in = (jnp.dot(onehot, table, preferred_element_type=jnp.float32)
                + blstm_ref[...])                                 # (S*8, 4*HID)

    whh = whh_ref[...]                                            # hoisted load
    lane = lax.broadcasted_iota(jnp.int32, (PAD_B, GATES), 1)
    tanh_lane = (lane >= 2 * HID) & (lane < 3 * HID)              # g-gate lanes

    h = jnp.zeros((PAD_B, HID), jnp.float32)
    c = jnp.zeros((PAD_B, HID), jnp.float32)
    m = jnp.full((PAD_B, HID), -jnp.inf, jnp.float32)             # fused max-pool acc

    # ---- unrolled recurrence: only h @ W_hh on the serial path ----
    for t in range(S):
        gates = gates_in[t * PAD_B:(t + 1) * PAD_B, :] + jnp.dot(
            h, whh, preferred_element_type=jnp.float32)           # (8, 4*HID), aligned
        # ONE EUP pass over the full vreg: sigmoid(x) = 0.5*(1 + tanh(x/2))
        pre = jnp.where(tanh_lane, gates, 0.5 * gates)
        th = jnp.tanh(pre)
        act = jnp.where(tanh_lane, th, 0.5 * th + 0.5)
        i_g = act[:, 0 * HID:1 * HID]
        f_g = act[:, 1 * HID:2 * HID]
        g_g = act[:, 2 * HID:3 * HID]
        o_g = act[:, 3 * HID:4 * HID]
        c = f_g * c + i_g * g_g
        h = o_g * jnp.tanh(c)
        m = jnp.maximum(m, h)                                     # AdaptiveMaxPool1d(1)

    # ---- classifier on the full padded tile (aligned), slice valid rows after ----
    hid = jnp.maximum(
        jnp.dot(m, w1_ref[...], preferred_element_type=jnp.float32) + b1_ref[...],
        0.0)                                                      # (8, MLP)
    logits_full = (jnp.dot(hid, w2_ref[...], preferred_element_type=jnp.float32)
                   + b2_ref[...])                                 # (8, LAB)
    logits = logits_full[:B, :]                                   # (B, LAB) valid rows
    y = lab_ref[...]                                              # (B, LAB) float

    # BCEWithLogitsLoss (numerically stable), mean over all elements.
    bce = jnp.maximum(logits, 0.0) - logits * y + jnp.log1p(jnp.exp(-jnp.abs(logits)))
    loss_ref[0, 0] = jnp.mean(bce)

    probs = jax.nn.sigmoid(logits)
    sm = jax.nn.softmax(probs, axis=1)

    # torch.topk(probs, TOPK, dim=1) -> one-hot mask of top-k positions,
    # via iterative arg-max with first-index tie break.
    idx = lax.broadcasted_iota(jnp.int32, probs.shape, 1)
    remaining = probs
    mask = jnp.zeros_like(probs)
    for _ in range(TOPK):
        cur_max = jnp.max(remaining, axis=1, keepdims=True)
        is_max = remaining == cur_max
        min_idx = jnp.min(jnp.where(is_max, idx, LAB), axis=1, keepdims=True)
        first = idx == min_idx
        mask = jnp.where(first, 1.0, mask)
        remaining = jnp.where(first, -jnp.inf, remaining)

    forgotten = jnp.sum(y * sm * (1.0 - mask), axis=1, keepdims=True)   # (B, 1)
    tkl_ref[0, 0] = jnp.mean(forgotten)

    preds_ref[...] = (probs > 0.3).astype(jnp.int32)


def fused_law_model(params, input_facts, law_labels_f32):
    # Time-major, 8-row-padded token ids: row r = t*8 + b (padding rows = -1).
    ids_pad = jnp.full((S, PAD_B), -1, jnp.int32)
    ids_pad = ids_pad.at[:, :B].set(jnp.transpose(input_facts).astype(jnp.int32))
    ids_col = ids_pad.reshape(S * PAD_B, 1)

    loss, tkl, preds = pl.pallas_call(
        fused_law_kernel,
        out_shape=(
            jax.ShapeDtypeStruct((1, 1), jnp.float32),    # law_loss
            jax.ShapeDtypeStruct((1, 1), jnp.float32),    # topk_loss
            jax.ShapeDtypeStruct((B, LAB), jnp.int32),    # law_preds
        ),
        in_specs=[
            pl.BlockSpec(memory_space=pltpu.MemorySpace.VMEM),    # token ids (padded)
            pl.BlockSpec(memory_space=pltpu.MemorySpace.VMEM),    # emb table
            pl.BlockSpec(memory_space=pltpu.MemorySpace.VMEM),    # w_ih
            pl.BlockSpec(memory_space=pltpu.MemorySpace.VMEM),    # w_hh
            pl.BlockSpec(memory_space=pltpu.MemorySpace.VMEM),    # b_lstm
            pl.BlockSpec(memory_space=pltpu.MemorySpace.VMEM),    # w1
            pl.BlockSpec(memory_space=pltpu.MemorySpace.VMEM),    # b1
            pl.BlockSpec(memory_space=pltpu.MemorySpace.VMEM),    # w2
            pl.BlockSpec(memory_space=pltpu.MemorySpace.VMEM),    # b2
            pl.BlockSpec(memory_space=pltpu.MemorySpace.VMEM),    # labels
        ],
        out_specs=(
            pl.BlockSpec(memory_space=pltpu.MemorySpace.SMEM),
            pl.BlockSpec(memory_space=pltpu.MemorySpace.SMEM),
            pl.BlockSpec(memory_space=pltpu.MemorySpace.VMEM),
        ),
        cost_estimate=pl.CostEstimate(flops=2_200_000, transcendentals=12_000,
                                      bytes_accessed=65_536),
    )(ids_col, params["emb"], params["w_ih"], params["w_hh"], params["b_lstm"],
      params["w1"], params["b1"], params["w2"], params["b2"], law_labels_f32)
    return loss, tkl, preds


# ----------------------------------- parameters -----------------------------------
def xavier_uniform(key, shape):
    fan_in, fan_out = shape
    limit = math.sqrt(6.0 / (fan_in + fan_out))
    return jax.random.uniform(key, shape, jnp.float32, -limit, limit)


def init_params(key):
    ks = jax.random.split(key, 6)
    emb = jax.random.uniform(ks[0], (VOCAB, EMB), jnp.float32, -0.1, 0.1)
    w_ih = xavier_uniform(ks[1], (EMB, 4 * HID))      # stored transposed vs torch
    w_hh = xavier_uniform(ks[2], (HID, 4 * HID))
    b_lstm = jnp.zeros((1, 4 * HID), jnp.float32)     # bias_ih + bias_hh (zeros)
    w1 = xavier_uniform(ks[3], (RNN_OUT, MLP))
    b1 = jnp.zeros((1, MLP), jnp.float32)
    w2 = xavier_uniform(ks[4], (MLP, LAB))
    b2 = jnp.zeros((1, LAB), jnp.float32)
    return dict(emb=emb, w_ih=w_ih, w_hh=w_hh, b_lstm=b_lstm,
                w1=w1, b1=b1, w2=w2, b2=b2)


# ----------------------------------- forward pass -----------------------------------
@jax.jit
def law_model_forward(params, input_facts, type_ids_list, attention_mask_list, law_labels):
    # type_ids_list / attention_mask_list are unused by LawModel.forward (kept for parity).
    del type_ids_list, attention_mask_list
    loss, tkl, preds = fused_law_model(params, input_facts,
                                       law_labels.astype(jnp.float32))
    return loss[0, 0], tkl[0, 0], preds


# ----------------------------- pure-JAX reference (check) -----------------------------
def reference_forward(params, input_facts, law_labels):
    x = jnp.take(params["emb"], input_facts, axis=0)
    w_ih, w_hh, b = params["w_ih"], params["w_hh"], params["b_lstm"][0]

    def step(carry, x_t):
        h, c = carry
        g = x_t @ w_ih + h @ w_hh + b
        i = jax.nn.sigmoid(g[:, :HID])
        f = jax.nn.sigmoid(g[:, HID:2 * HID])
        gg = jnp.tanh(g[:, 2 * HID:3 * HID])
        o = jax.nn.sigmoid(g[:, 3 * HID:])
        c = f * c + i * gg
        h = o * jnp.tanh(c)
        return (h, c), h

    init = (jnp.zeros((B, HID), jnp.float32), jnp.zeros((B, HID), jnp.float32))
    _, hs = lax.scan(step, init, jnp.transpose(x, (1, 0, 2)))
    doc = jnp.max(hs, axis=0)

    y = law_labels.astype(jnp.float32)
    h = jnp.maximum(doc @ params["w1"] + params["b1"][0], 0.0)
    logits = h @ params["w2"] + params["b2"][0]
    bce = jnp.maximum(logits, 0.0) - logits * y + jnp.log1p(jnp.exp(-jnp.abs(logits)))
    law_loss = jnp.mean(bce)
    probs = jax.nn.sigmoid(logits)
    sm = jax.nn.softmax(probs, axis=1)
    _, topk_idx = lax.top_k(probs, TOPK)
    mask = jnp.zeros_like(probs).at[jnp.arange(B)[:, None], topk_idx].set(1.0)
    topk_loss = jnp.mean(jnp.sum(y * sm * (1.0 - mask), axis=1))
    preds = (probs > 0.3).astype(jnp.int32)
    return law_loss, topk_loss, preds


# ----------------------------------------- main -----------------------------------------
if __name__ == "__main__":
    key = jax.random.PRNGKey(0)
    kp, ki, kl = jax.random.split(key, 3)

    params = init_params(kp)
    input_facts = jax.random.randint(ki, (B, S), 0, VOCAB, dtype=jnp.int32)
    type_ids = jnp.zeros((B, S), jnp.int32)
    attn_mask = jnp.ones((B, S), jnp.int32)
    law_labels = jax.random.bernoulli(kl, 0.3, (B, LAB)).astype(jnp.int32)

    law_loss, topk_loss, law_preds = law_model_forward(
        params, input_facts, type_ids, attn_mask, law_labels)
    jax.block_until_ready((law_loss, topk_loss, law_preds))

    ref_loss, ref_topk, ref_preds = reference_forward(params, input_facts, law_labels)
    assert jnp.allclose(law_loss, ref_loss, rtol=2e-3, atol=2e-3), (law_loss, ref_loss)
    assert jnp.allclose(topk_loss, ref_topk, rtol=2e-3, atol=2e-3), (topk_loss, ref_topk)
    assert law_preds.shape == (B, LAB) and law_preds.dtype == jnp.int32
    assert bool(jnp.all(law_preds == ref_preds))

    print("KERNEL_OK")
</pallas_src>

<mosaic_0001>
module attributes {stable_mosaic.version = 11 : i64} {
  func.func @fused_law_kernel(%arg0: memref<64x1xi32, #tpu.memory_space<vmem>>, %arg1: memref<64x32xf32, #tpu.memory_space<vmem>>, %arg2: memref<32x128xf32, #tpu.memory_space<vmem>>, %arg3: memref<32x128xf32, #tpu.memory_space<vmem>>, %arg4: memref<1x128xf32, #tpu.memory_space<vmem>>, %arg5: memref<32x32xf32, #tpu.memory_space<vmem>>, %arg6: memref<1x32xf32, #tpu.memory_space<vmem>>, %arg7: memref<32x16xf32, #tpu.memory_space<vmem>>, %arg8: memref<1x16xf32, #tpu.memory_space<vmem>>, %arg9: memref<2x16xf32, #tpu.memory_space<vmem>>, %arg10: memref<1x1xf32, #tpu.memory_space<smem>>, %arg11: memref<1x1xf32, #tpu.memory_space<smem>>, %arg12: memref<2x16xi32, #tpu.memory_space<vmem>>) attributes {dimension_semantics = [], scalar_prefetch = 0 : i64, scratch_operands = 0 : i64, tpu.core_type = #tpu.core_type<tc>} {
    %c0 = arith.constant 0 : index
    %c0_0 = arith.constant 0 : index
    %0 = vector.load %arg1[%c0, %c0_0] : memref<64x32xf32, #tpu.memory_space<vmem>>, vector<64x32xf32>
    %c0_1 = arith.constant 0 : index
    %c0_2 = arith.constant 0 : index
    %1 = vector.load %arg2[%c0_1, %c0_2] : memref<32x128xf32, #tpu.memory_space<vmem>>, vector<32x128xf32>
    %cst = arith.constant dense<0.000000e+00> : vector<64x128xf32>
    %2 = tpu.matmul %0, %1, %cst {dimension_numbers = #tpu.dot_dimension_numbers<[1], [0], [0], [1], [0, 0, 1, 1], [], []>} : vector<64x32xf32>, vector<32x128xf32>, vector<64x128xf32> -> vector<64x128xf32>
    %3 = tpu.iota {dimensions = array<i32: 1>} : vector<64x64xi32>
    %c0_3 = arith.constant 0 : index
    %c0_4 = arith.constant 0 : index
    %4 = vector.load %arg0[%c0_3, %c0_4] : memref<64x1xi32, #tpu.memory_space<vmem>>, vector<64x1xi32>
    %5 = vector.broadcast %4 : vector<64x1xi32> to vector<64x64xi32>
    %6 = arith.cmpi eq, %3, %5 : vector<64x64xi32>
    %7 = arith.extui %6 : vector<64x64xi1> to vector<64x64xi32>
    %8 = arith.sitofp %7 : vector<64x64xi32> to vector<64x64xf32>
    %cst_5 = arith.constant dense<0.000000e+00> : vector<64x128xf32>
    %9 = tpu.matmul %8, %2, %cst_5 {dimension_numbers = #tpu.dot_dimension_numbers<[1], [0], [0], [1], [0, 0, 1, 1], [], []>} : vector<64x64xf32>, vector<64x128xf32>, vector<64x128xf32> -> vector<64x128xf32>
    %c0_6 = arith.constant 0 : index
    %c0_7 = arith.constant 0 : index
    %10 = vector.load %arg4[%c0_6, %c0_7] : memref<1x128xf32, #tpu.memory_space<vmem>>, vector<1x128xf32>
    %11 = vector.broadcast %10 : vector<1x128xf32> to vector<64x128xf32>
    %12 = arith.addf %9, %11 : vector<64x128xf32>
    %c0_8 = arith.constant 0 : index
    %c0_9 = arith.constant 0 : index
    %13 = vector.load %arg3[%c0_8, %c0_9] : memref<32x128xf32, #tpu.memory_space<vmem>>, vector<32x128xf32>
    %14 = tpu.iota {dimensions = array<i32: 1>} : vector<8x128xi32>
    %c64_i32 = arith.constant 64 : i32
    %15 = vector.broadcast %c64_i32 : i32 to vector<8x128xi32>
    %16 = arith.cmpi sge, %14, %15 : vector<8x128xi32>
    %c96_i32 = arith.constant 96 : i32
    %17 = vector.broadcast %c96_i32 : i32 to vector<8x128xi32>
    %18 = arith.cmpi slt, %14, %17 : vector<8x128xi32>
    %19 = arith.andi %16, %18 : vector<8x128xi1>
    %cst_10 = arith.constant 0.000000e+00 : f32
    %20 = vector.broadcast %cst_10 : f32 to vector<8x32xf32>
    %cst_11 = arith.constant 0.000000e+00 : f32
    %21 = vector.broadcast %cst_11 : f32 to vector<8x32xf32>
    %cst_12 = arith.constant 0xFF800000 : f32
    %22 = vector.broadcast %cst_12 : f32 to vector<8x32xf32>
    %23 = vector.extract_strided_slice %12 {offsets = [0, 0], sizes = [8, 128], strides = [1, 1]} : vector<64x128xf32> to vector<8x128xf32>
    %cst_13 = arith.constant dense<0.000000e+00> : vector<8x128xf32>
    %24 = tpu.matmul %20, %13, %cst_13 {dimension_numbers = #tpu.dot_dimension_numbers<[1], [0], [0], [1], [0, 0, 1, 1], [], []>} : vector<8x32xf32>, vector<32x128xf32>, vector<8x128xf32> -> vector<8x128xf32>
    %25 = arith.addf %23, %24 : vector<8x128xf32>
    %cst_14 = arith.constant 5.000000e-01 : f32
    %26 = vector.broadcast %cst_14 : f32 to vector<8x128xf32>
    %27 = arith.mulf %26, %25 : vector<8x128xf32>
    %28 = arith.select %19, %25, %27 : vector<8x128xi1>, vector<8x128xf32>
    %29 = math.tanh %28 : vector<8x128xf32>
    %cst_15 = arith.constant 5.000000e-01 : f32
    %30 = vector.broadcast %cst_15 : f32 to vector<8x128xf32>
    %31 = arith.mulf %30, %29 : vector<8x128xf32>
    %cst_16 = arith.constant 5.000000e-01 : f32
    %32 = vector.broadcast %cst_16 : f32 to vector<8x128xf32>
    %33 = arith.addf %31, %32 : vector<8x128xf32>
    %34 = arith.select %19, %29, %33 : vector<8x128xi1>, vector<8x128xf32>
    %35 = vector.extract_strided_slice %34 {offsets = [0, 0], sizes = [8, 32], strides = [1, 1]} : vector<8x128xf32> to vector<8x32xf32>
    %36 = vector.extract_strided_slice %34 {offsets = [0, 32], sizes = [8, 32], strides = [1, 1]} : vector<8x128xf32> to vector<8x32xf32>
    %37 = vector.extract_strided_slice %34 {offsets = [0, 64], sizes = [8, 32], strides = [1, 1]} : vector<8x128xf32> to vector<8x32xf32>
    %38 = vector.extract_strided_slice %34 {offsets = [0, 96], sizes = [8, 32], strides = [1, 1]} : vector<8x128xf32> to vector<8x32xf32>
    %39 = arith.mulf %36, %21 : vector<8x32xf32>
    %40 = arith.mulf %35, %37 : vector<8x32xf32>
    %41 = arith.addf %39, %40 : vector<8x32xf32>
    %42 = math.tanh %41 : vector<8x32xf32>
    %43 = arith.mulf %38, %42 : vector<8x32xf32>
    %44 = arith.maximumf %22, %43 : vector<8x32xf32>
    %45 = vector.extract_strided_slice %12 {offsets = [8, 0], sizes = [8, 128], strides = [1, 1]} : vector<64x128xf32> to vector<8x128xf32>
    %cst_17 = arith.constant dense<0.000000e+00> : vector<8x128xf32>
    %46 = tpu.matmul %43, %13, %cst_17 {dimension_numbers = #tpu.dot_dimension_numbers<[1], [0], [0], [1], [0, 0, 1, 1], [], []>} : vector<8x32xf32>, vector<32x128xf32>, vector<8x128xf32> -> vector<8x128xf32>
    %47 = arith.addf %45, %46 : vector<8x128xf32>
    %cst_18 = arith.constant 5.000000e-01 : f32
    %48 = vector.broadcast %cst_18 : f32 to vector<8x128xf32>
    %49 = arith.mulf %48, %47 : vector<8x128xf32>
    %50 = arith.select %19, %47, %49 : vector<8x128xi1>, vector<8x128xf32>
    %51 = math.tanh %50 : vector<8x128xf32>
    %cst_19 = arith.constant 5.000000e-01 : f32
    %52 = vector.broadcast %cst_19 : f32 to vector<8x128xf32>
    %53 = arith.mulf %52, %51 : vector<8x128xf32>
    %cst_20 = arith.constant 5.000000e-01 : f32
    %54 = vector.broadcast %cst_20 : f32 to vector<8x128xf32>
    %55 = arith.addf %53, %54 : vector<8x128xf32>
    %56 = arith.select %19, %51, %55 : vector<8x128xi1>, vector<8x128xf32>
    %57 = vector.extract_strided_slice %56 {offsets = [0, 0], sizes = [8, 32], strides = [1, 1]} : vector<8x128xf32> to vector<8x32xf32>
    %58 = vector.extract_strided_slice %56 {offsets = [0, 32], sizes = [8, 32], strides = [1, 1]} : vector<8x128xf32> to vector<8x32xf32>
    %59 = vector.extract_strided_slice %56 {offsets = [0, 64], sizes = [8, 32], strides = [1, 1]} : vector<8x128xf32> to vector<8x32xf32>
    %60 = vector.extract_strided_slice %56 {offsets = [0, 96], sizes = [8, 32], strides = [1, 1]} : vector<8x128xf32> to vector<8x32xf32>
    %61 = arith.mulf %58, %41 : vector<8x32xf32>
    %62 = arith.mulf %57, %59 : vector<8x32xf32>
    %63 = arith.addf %61, %62 : vector<8x32xf32>
    %64 = math.tanh %63 : vector<8x32xf32>
    %65 = arith.mulf %60, %64 : vector<8x32xf32>
    %66 = arith.maximumf %44, %65 : vector<8x32xf32>
    %67 = vector.extract_strided_slice %12 {offsets = [16, 0], sizes = [8, 128], strides = [1, 1]} : vector<64x128xf32> to vector<8x128xf32>
    %cst_21 = arith.constant dense<0.000000e+00> : vector<8x128xf32>
    %68 = tpu.matmul %65, %13, %cst_21 {dimension_numbers = #tpu.dot_dimension_numbers<[1], [0], [0], [1], [0, 0, 1, 1], [], []>} : vector<8x32xf32>, vector<32x128xf32>, vector<8x128xf32> -> vector<8x128xf32>
    %69 = arith.addf %67, %68 : vector<8x128xf32>
    %cst_22 = arith.constant 5.000000e-01 : f32
    %70 = vector.broadcast %cst_22 : f32 to vector<8x128xf32>
    %71 = arith.mulf %70, %69 : vector<8x128xf32>
    %72 = arith.select %19, %69, %71 : vector<8x128xi1>, vector<8x128xf32>
    %73 = math.tanh %72 : vector<8x128xf32>
    %cst_23 = arith.constant 5.000000e-01 : f32
    %74 = vector.broadcast %cst_23 : f32 to vector<8x128xf32>
    %75 = arith.mulf %74, %73 : vector<8x128xf32>
    %cst_24 = arith.constant 5.000000e-01 : f32
    %76 = vector.broadcast %cst_24 : f32 to vector<8x128xf32>
    %77 = arith.addf %75, %76 : vector<8x128xf32>
    %78 = arith.select %19, %73, %77 : vector<8x128xi1>, vector<8x128xf32>
    %79 = vector.extract_strided_slice %78 {offsets = [0, 0], sizes = [8, 32], strides = [1, 1]} : vector<8x128xf32> to vector<8x32xf32>
    %80 = vector.extract_strided_slice %78 {offsets = [0, 32], sizes = [8, 32], strides = [1, 1]} : vector<8x128xf32> to vector<8x32xf32>
    %81 = vector.extract_strided_slice %78 {offsets = [0, 64], sizes = [8, 32], strides = [1, 1]} : vector<8x128xf32> to vector<8x32xf32>
    %82 = vector.extract_strided_slice %78 {offsets = [0, 96], sizes = [8, 32], strides = [1, 1]} : vector<8x128xf32> to vector<8x32xf32>
    %83 = arith.mulf %80, %63 : vector<8x32xf32>
    %84 = arith.mulf %79, %81 : vector<8x32xf32>
    %85 = arith.addf %83, %84 : vector<8x32xf32>
    %86 = math.tanh %85 : vector<8x32xf32>
    %87 = arith.mulf %82, %86 : vector<8x32xf32>
    %88 = arith.maximumf %66, %87 : vector<8x32xf32>
    %89 = vector.extract_strided_slice %12 {offsets = [24, 0], sizes = [8, 128], strides = [1, 1]} : vector<64x128xf32> to vector<8x128xf32>
    %cst_25 = arith.constant dense<0.000000e+00> : vector<8x128xf32>
    %90 = tpu.matmul %87, %13, %cst_25 {dimension_numbers = #tpu.dot_dimension_numbers<[1], [0], [0], [1], [0, 0, 1, 1], [], []>} : vector<8x32xf32>, vector<32x128xf32>, vector<8x128xf32> -> vector<8x128xf32>
    %91 = arith.addf %89, %90 : vector<8x128xf32>
    %cst_26 = arith.constant 5.000000e-01 : f32
    %92 = vector.broadcast %cst_26 : f32 to vector<8x128xf32>
    %93 = arith.mulf %92, %91 : vector<8x128xf32>
    %94 = arith.select %19, %91, %93 : vector<8x128xi1>, vector<8x128xf32>
    %95 = math.tanh %94 : vector<8x128xf32>
    %cst_27 = arith.constant 5.000000e-01 : f32
    %96 = vector.broadcast %cst_27 : f32 to vector<8x128xf32>
    %97 = arith.mulf %96, %95 : vector<8x128xf32>
    %cst_28 = arith.constant 5.000000e-01 : f32
    %98 = vector.broadcast %cst_28 : f32 to vector<8x128xf32>
    %99 = arith.addf %97, %98 : vector<8x128xf32>
    %100 = arith.select %19, %95, %99 : vector<8x128xi1>, vector<8x128xf32>
    %101 = vector.extract_strided_slice %100 {offsets = [0, 0], sizes = [8, 32], strides = [1, 1]} : vector<8x128xf32> to vector<8x32xf32>
    %102 = vector.extract_strided_slice %100 {offsets = [0, 32], sizes = [8, 32], strides = [1, 1]} : vector<8x128xf32> to vector<8x32xf32>
    %103 = vector.extract_strided_slice %100 {offsets = [0, 64], sizes = [8, 32], strides = [1, 1]} : vector<8x128xf32> to vector<8x32xf32>
    %104 = vector.extract_strided_slice %100 {offsets = [0, 96], sizes = [8, 32], strides = [1, 1]} : vector<8x128xf32> to vector<8x32xf32>
    %105 = arith.mulf %102, %85 : vector<8x32xf32>
    %106 = arith.mulf %101, %103 : vector<8x32xf32>
    %107 = arith.addf %105, %106 : vector<8x32xf32>
    %108 = math.tanh %107 : vector<8x32xf32>
    %109 = arith.mulf %104, %108 : vector<8x32xf32>
    %110 = arith.maximumf %88, %109 : vector<8x32xf32>
    %111 = vector.extract_strided_slice %12 {offsets = [32, 0], sizes = [8, 128], strides = [1, 1]} : vector<64x128xf32> to vector<8x128xf32>
    %cst_29 = arith.constant dense<0.000000e+00> : vector<8x128xf32>
    %112 = tpu.matmul %109, %13, %cst_29 {dimension_numbers = #tpu.dot_dimension_numbers<[1], [0], [0], [1], [0, 0, 1, 1], [], []>} : vector<8x32xf32>, vector<32x128xf32>, vector<8x128xf32> -> vector<8x128xf32>
    %113 = arith.addf %111, %112 : vector<8x128xf32>
    %cst_30 = arith.constant 5.000000e-01 : f32
    %114 = vector.broadcast %cst_30 : f32 to vector<8x128xf32>
    %115 = arith.mulf %114, %113 : vector<8x128xf32>
    %116 = arith.select %19, %113, %115 : vector<8x128xi1>, vector<8x128xf32>
    %117 = math.tanh %116 : vector<8x128xf32>
    %cst_31 = arith.constant 5.000000e-01 : f32
    %118 = vector.broadcast %cst_31 : f32 to vector<8x128xf32>
    %119 = arith.mulf %118, %117 : vector<8x128xf32>
    %cst_32 = arith.constant 5.000000e-01 : f32
    %120 = vector.broadcast %cst_32 : f32 to vector<8x128xf32>
    %121 = arith.addf %119, %120 : vector<8x128xf32>
    %122 = arith.select %19, %117, %121 : vector<8x128xi1>, vector<8x128xf32>
    %123 = vector.extract_strided_slice %122 {offsets = [0, 0], sizes = [8, 32], strides = [1, 1]} : vector<8x128xf32> to vector<8x32xf32>
    %124 = vector.extract_strided_slice %122 {offsets = [0, 32], sizes = [8, 32], strides = [1, 1]} : vector<8x128xf32> to vector<8x32xf32>
    %125 = vector.extract_strided_slice %122 {offsets = [0, 64], sizes = [8, 32], strides = [1, 1]} : vector<8x128xf32> to vector<8x32xf32>
    %126 = vector.extract_strided_slice %122 {offsets = [0, 96], sizes = [8, 32], strides = [1, 1]} : vector<8x128xf32> to vector<8x32xf32>
    %127 = arith.mulf %124, %107 : vector<8x32xf32>
    %128 = arith.mulf %123, %125 : vector<8x32xf32>
    %129 = arith.addf %127, %128 : vector<8x32xf32>
    %130 = math.tanh %129 : vector<8x32xf32>
    %131 = arith.mulf %126, %130 : vector<8x32xf32>
    %132 = arith.maximumf %110, %131 : vector<8x32xf32>
    %133 = vector.extract_strided_slice %12 {offsets = [40, 0], sizes = [8, 128], strides = [1, 1]} : vector<64x128xf32> to vector<8x128xf32>
    %cst_33 = arith.constant dense<0.000000e+00> : vector<8x128xf32>
    %134 = tpu.matmul %131, %13, %cst_33 {dimension_numbers = #tpu.dot_dimension_numbers<[1], [0], [0], [1], [0, 0, 1, 1], [], []>} : vector<8x32xf32>, vector<32x128xf32>, vector<8x128xf32> -> vector<8x128xf32>
    %135 = arith.addf %133, %134 : vector<8x128xf32>
    %cst_34 = arith.constant 5.000000e-01 : f32
    %136 = vector.broadcast %cst_34 : f32 to vector<8x128xf32>
    %137 = arith.mulf %136, %135 : vector<8x128xf32>
    %138 = arith.select %19, %135, %137 : vector<8x128xi1>, vector<8x128xf32>
    %139 = math.tanh %138 : vector<8x128xf32>
    %cst_35 = arith.constant 5.000000e-01 : f32
    %140 = vector.broadcast %cst_35 : f32 to vector<8x128xf32>
    %141 = arith.mulf %140, %139 : vector<8x128xf32>
    %cst_36 = arith.constant 5.000000e-01 : f32
    %142 = vector.broadcast %cst_36 : f32 to vector<8x128xf32>
    %143 = arith.addf %141, %142 : vector<8x128xf32>
    %144 = arith.select %19, %139, %143 : vector<8x128xi1>, vector<8x128xf32>
    %145 = vector.extract_strided_slice %144 {offsets = [0, 0], sizes = [8, 32], strides = [1, 1]} : vector<8x128xf32> to vector<8x32xf32>
    %146 = vector.extract_strided_slice %144 {offsets = [0, 32], sizes = [8, 32], strides = [1, 1]} : vector<8x128xf32> to vector<8x32xf32>
    %147 = vector.extract_strided_slice %144 {offsets = [0, 64], sizes = [8, 32], strides = [1, 1]} : vector<8x128xf32> to vector<8x32xf32>
    %148 = vector.extract_strided_slice %144 {offsets = [0, 96], sizes = [8, 32], strides = [1, 1]} : vector<8x128xf32> to vector<8x32xf32>
    %149 = arith.mulf %146, %129 : vector<8x32xf32>
    %150 = arith.mulf %145, %147 : vector<8x32xf32>
    %151 = arith.addf %149, %150 : vector<8x32xf32>
    %152 = math.tanh %151 : vector<8x32xf32>
    %153 = arith.mulf %148, %152 : vector<8x32xf32>
    %154 = arith.maximumf %132, %153 : vector<8x32xf32>
    %155 = vector.extract_strided_slice %12 {offsets = [48, 0], sizes = [8, 128], strides = [1, 1]} : vector<64x128xf32> to vector<8x128xf32>
    %cst_37 = arith.constant dense<0.000000e+00> : vector<8x128xf32>
    %156 = tpu.matmul %153, %13, %cst_37 {dimension_numbers = #tpu.dot_dimension_numbers<[1], [0], [0], [1], [0, 0, 1, 1], [], []>} : vector<8x32xf32>, vector<32x128xf32>, vector<8x128xf32> -> vector<8x128xf32>
    %157 = arith.addf %155, %156 : vector<8x128xf32>
    %cst_38 = arith.constant 5.000000e-01 : f32
    %158 = vector.broadcast %cst_38 : f32 to vector<8x128xf32>
    %159 = arith.mulf %158, %157 : vector<8x128xf32>
    %160 = arith.select %19, %157, %159 : vector<8x128xi1>, vector<8x128xf32>
    %161 = math.tanh %160 : vector<8x128xf32>
    %cst_39 = arith.constant 5.000000e-01 : f32
    %162 = vector.broadcast %cst_39 : f32 to vector<8x128xf32>
    %163 = arith.mulf %162, %161 : vector<8x128xf32>
    %cst_40 = arith.constant 5.000000e-01 : f32
    %164 = vector.broadcast %cst_40 : f32 to vector<8x128xf32>
    %165 = arith.addf %163, %164 : vector<8x128xf32>
    %166 = arith.select %19, %161, %165 : vector<8x128xi1>, vector<8x128xf32>
    %167 = vector.extract_strided_slice %166 {offsets = [0, 0], sizes = [8, 32], strides = [1, 1]} : vector<8x128xf32> to vector<8x32xf32>
    %168 = vector.extract_strided_slice %166 {offsets = [0, 32], sizes = [8, 32], strides = [1, 1]} : vector<8x128xf32> to vector<8x32xf32>
    %169 = vector.extract_strided_slice %166 {offsets = [0, 64], sizes = [8, 32], strides = [1, 1]} : vector<8x128xf32> to vector<8x32xf32>
    %170 = vector.extract_strided_slice %166 {offsets = [0, 96], sizes = [8, 32], strides = [1, 1]} : vector<8x128xf32> to vector<8x32xf32>
    %171 = arith.mulf %168, %151 : vector<8x32xf32>
    %172 = arith.mulf %167, %169 : vector<8x32xf32>
    %173 = arith.addf %171, %172 : vector<8x32xf32>
    %174 = math.tanh %173 : vector<8x32xf32>
    %175 = arith.mulf %170, %174 : vector<8x32xf32>
    %176 = arith.maximumf %154, %175 : vector<8x32xf32>
    %177 = vector.extract_strided_slice %12 {offsets = [56, 0], sizes = [8, 128], strides = [1, 1]} : vector<64x128xf32> to vector<8x128xf32>
    %cst_41 = arith.constant dense<0.000000e+00> : vector<8x128xf32>
    %178 = tpu.matmul %175, %13, %cst_41 {dimension_numbers = #tpu.dot_dimension_numbers<[1], [0], [0], [1], [0, 0, 1, 1], [], []>} : vector<8x32xf32>, vector<32x128xf32>, vector<8x128xf32> -> vector<8x128xf32>
    %179 = arith.addf %177, %178 : vector<8x128xf32>
    %cst_42 = arith.constant 5.000000e-01 : f32
    %180 = vector.broadcast %cst_42 : f32 to vector<8x128xf32>
    %181 = arith.mulf %180, %179 : vector<8x128xf32>
    %182 = arith.select %19, %179, %181 : vector<8x128xi1>, vector<8x128xf32>
    %183 = math.tanh %182 : vector<8x128xf32>
    %cst_43 = arith.constant 5.000000e-01 : f32
    %184 = vector.broadcast %cst_43 : f32 to vector<8x128xf32>
    %185 = arith.mulf %184, %183 : vector<8x128xf32>
    %cst_44 = arith.constant 5.000000e-01 : f32
    %186 = vector.broadcast %cst_44 : f32 to vector<8x128xf32>
    %187 = arith.addf %185, %186 : vector<8x128xf32>
    %188 = arith.select %19, %183, %187 : vector<8x128xi1>, vector<8x128xf32>
    %189 = vector.extract_strided_slice %188 {offsets = [0, 0], sizes = [8, 32], strides = [1, 1]} : vector<8x128xf32> to vector<8x32xf32>
    %190 = vector.extract_strided_slice %188 {offsets = [0, 32], sizes = [8, 32], strides = [1, 1]} : vector<8x128xf32> to vector<8x32xf32>
    %191 = vector.extract_strided_slice %188 {offsets = [0, 64], sizes = [8, 32], strides = [1, 1]} : vector<8x128xf32> to vector<8x32xf32>
    %192 = vector.extract_strided_slice %188 {offsets = [0, 96], sizes = [8, 32], strides = [1, 1]} : vector<8x128xf32> to vector<8x32xf32>
    %193 = arith.mulf %190, %173 : vector<8x32xf32>
    %194 = arith.mulf %189, %191 : vector<8x32xf32>
    %195 = arith.addf %193, %194 : vector<8x32xf32>
    %196 = math.tanh %195 : vector<8x32xf32>
    %197 = arith.mulf %192, %196 : vector<8x32xf32>
    %198 = arith.maximumf %176, %197 : vector<8x32xf32>
    %c0_45 = arith.constant 0 : index
    %c0_46 = arith.constant 0 : index
    %199 = vector.load %arg5[%c0_45, %c0_46] : memref<32x32xf32, #tpu.memory_space<vmem>>, vector<32x32xf32>
    %cst_47 = arith.constant dense<0.000000e+00> : vector<8x32xf32>
    %200 = tpu.matmul %198, %199, %cst_47 {dimension_numbers = #tpu.dot_dimension_numbers<[1], [0], [0], [1], [0, 0, 1, 1], [], []>} : vector<8x32xf32>, vector<32x32xf32>, vector<8x32xf32> -> vector<8x32xf32>
    %c0_48 = arith.constant 0 : index
    %c0_49 = arith.constant 0 : index
    %201 = vector.load %arg6[%c0_48, %c0_49] : memref<1x32xf32, #tpu.memory_space<vmem>>, vector<1x32xf32>
    %202 = vector.broadcast %201 : vector<1x32xf32> to vector<8x32xf32>
    %203 = arith.addf %200, %202 : vector<8x32xf32>
    %cst_50 = arith.constant 0.000000e+00 : f32
    %204 = vector.broadcast %cst_50 : f32 to vector<8x32xf32>
    %205 = arith.maximumf %203, %204 : vector<8x32xf32>
    %c0_51 = arith.constant 0 : index
    %c0_52 = arith.constant 0 : index
    %206 = vector.load %arg7[%c0_51, %c0_52] : memref<32x16xf32, #tpu.memory_space<vmem>>, vector<32x16xf32>
    %cst_53 = arith.constant dense<0.000000e+00> : vector<8x16xf32>
    %207 = tpu.matmul %205, %206, %cst_53 {dimension_numbers = #tpu.dot_dimension_numbers<[1], [0], [0], [1], [0, 0, 1, 1], [], []>} : vector<8x32xf32>, vector<32x16xf32>, vector<8x16xf32> -> vector<8x16xf32>
    %c0_54 = arith.constant 0 : index
    %c0_55 = arith.constant 0 : index
    %208 = vector.load %arg8[%c0_54, %c0_55] : memref<1x16xf32, #tpu.memory_space<vmem>>, vector<1x16xf32>
    %209 = vector.broadcast %208 : vector<1x16xf32> to vector<8x16xf32>
    %210 = arith.addf %207, %209 : vector<8x16xf32>
    %211 = vector.extract_strided_slice %210 {offsets = [0, 0], sizes = [2, 16], strides = [1, 1]} : vector<8x16xf32> to vector<2x16xf32>
    %c0_56 = arith.constant 0 : index
    %c0_57 = arith.constant 0 : index
    %212 = vector.load %arg9[%c0_56, %c0_57] : memref<2x16xf32, #tpu.memory_space<vmem>>, vector<2x16xf32>
    %cst_58 = arith.constant 0.000000e+00 : f32
    %213 = vector.broadcast %cst_58 : f32 to vector<2x16xf32>
    %214 = arith.maximumf %211, %213 : vector<2x16xf32>
    %215 = arith.mulf %211, %212 : vector<2x16xf32>
    %216 = arith.subf %214, %215 : vector<2x16xf32>
    %217 = math.absf %211 : vector<2x16xf32>
    %cst_59 = arith.constant 0.000000e+00 : f32
    %218 = vector.broadcast %cst_59 : f32 to vector<2x16xf32>
    %219 = arith.subf %218, %217 : vector<2x16xf32>
    %220 = math.exp %219 : vector<2x16xf32>
    %221 = math.log1p %220 : vector<2x16xf32>
    %222 = arith.addf %216, %221 : vector<2x16xf32>
    %223 = vector.shape_cast %222 : vector<2x16xf32> to vector<1x2x16xf32>
    %cst_60 = arith.constant dense<0.000000e+00> : vector<1xf32>
    %224 = vector.multi_reduction <add>, %223, %cst_60 [1, 2] : vector<1x2x16xf32> to vector<1xf32>
    %225 = vector.shape_cast %224 : vector<1xf32> to vector<1x1x1xf32>
    %226 = vector.extract %225[0, 0, 0] : f32 from vector<1x1x1xf32>
    %cst_61 = arith.constant 3.200000e+01 : f32
    %227 = arith.divf %226, %cst_61 : f32
    %c0_62 = arith.constant 0 : index
    %c0_63 = arith.constant 0 : index
    %228 = memref.load %arg10[%c0_62, %c0_63] : memref<1x1xf32, #tpu.memory_space<smem>>
    memref.store %227, %arg10[%c0_62, %c0_63] : memref<1x1xf32, #tpu.memory_space<smem>>
    %229 = arith.negf %211 : vector<2x16xf32>
    %230 = math.exp %229 : vector<2x16xf32>
    %cst_64 = arith.constant 1.000000e+00 : f32
    %231 = vector.broadcast %cst_64 : f32 to vector<2x16xf32>
    %232 = arith.addf %231, %230 : vector<2x16xf32>
    %233 = arith.divf %231, %232 : vector<2x16xf32>
    %cst_65 = arith.constant dense<0xFF800000> : vector<2xf32>
    %234 = vector.multi_reduction <maximumf>, %233, %cst_65 [1] : vector<2x16xf32> to vector<2xf32>
    %cst_66 = arith.constant 0xFF800000 : f32
    %235 = vector.broadcast %cst_66 : f32 to vector<2xf32>
    %236 = arith.maximumf %235, %234 : vector<2xf32>
    %237 = vector.shape_cast %236 : vector<2xf32> to vector<2x1xf32>
    %238 = vector.broadcast %237 : vector<2x1xf32> to vector<2x16xf32>
    %239 = arith.subf %233, %238 : vector<2x16xf32>
    %240 = math.exp %239 : vector<2x16xf32>
    %cst_67 = arith.constant dense<0.000000e+00> : vector<2xf32>
    %241 = vector.multi_reduction <add>, %240, %cst_67 [1] : vector<2x16xf32> to vector<2xf32>
    %242 = vector.shape_cast %241 : vector<2xf32> to vector<2x1xf32>
    %243 = vector.broadcast %242 : vector<2x1xf32> to vector<2x16xf32>
    %244 = arith.divf %240, %243 : vector<2x16xf32>
    %245 = tpu.iota {dimensions = array<i32: 1>} : vector<2x16xi32>
    %cst_68 = arith.constant 0.000000e+00 : f32
    %246 = vector.broadcast %cst_68 : f32 to vector<2x16xf32>
    %cst_69 = arith.constant dense<0xFF800000> : vector<2xf32>
    %247 = vector.multi_reduction <maximumf>, %233, %cst_69 [1] : vector<2x16xf32> to vector<2xf32>
    %248 = vector.shape_cast %247 : vector<2xf32> to vector<2x1xf32>
    %249 = vector.broadcast %248 : vector<2x1xf32> to vector<2x16xf32>
    %250 = arith.cmpf oeq, %233, %249 : vector<2x16xf32>
    %c16_i32 = arith.constant 16 : i32
    %251 = vector.broadcast %c16_i32 : i32 to vector<2x16xi32>
    %252 = arith.select %250, %245, %251 : vector<2x16xi1>, vector<2x16xi32>
    %cst_70 = arith.constant dense<2147483647> : vector<2xi32>
    %253 = vector.multi_reduction <minsi>, %252, %cst_70 [1] : vector<2x16xi32> to vector<2xi32>
    %254 = vector.shape_cast %253 : vector<2xi32> to vector<2x1xi32>
    %255 = vector.broadcast %254 : vector<2x1xi32> to vector<2x16xi32>
    %256 = arith.cmpi eq, %245, %255 : vector<2x16xi32>
    %cst_71 = arith.constant 1.000000e+00 : f32
    %257 = vector.broadcast %cst_71 : f32 to vector<2x16xf32>
    %258 = arith.select %256, %257, %246 : vector<2x16xi1>, vector<2x16xf32>
    %cst_72 = arith.constant 0xFF800000 : f32
    %259 = vector.broadcast %cst_72 : f32 to vector<2x16xf32>
    %260 = arith.select %256, %259, %233 : vector<2x16xi1>, vector<2x16xf32>
    %cst_73 = arith.constant dense<0xFF800000> : vector<2xf32>
    %261 = vector.multi_reduction <maximumf>, %260, %cst_73 [1] : vector<2x16xf32> to vector<2xf32>
    %262 = vector.shape_cast %261 : vector<2xf32> to vector<2x1xf32>
    %263 = vector.broadcast %262 : vector<2x1xf32> to vector<2x16xf32>
    %264 = arith.cmpf oeq, %260, %263 : vector<2x16xf32>
    %c16_i32_74 = arith.constant 16 : i32
    %265 = vector.broadcast %c16_i32_74 : i32 to vector<2x16xi32>
    %266 = arith.select %264, %245, %265 : vector<2x16xi1>, vector<2x16xi32>
    %cst_75 = arith.constant dense<2147483647> : vector<2xi32>
    %267 = vector.multi_reduction <minsi>, %266, %cst_75 [1] : vector<2x16xi32> to vector<2xi32>
    %268 = vector.shape_cast %267 : vector<2xi32> to vector<2x1xi32>
    %269 = vector.broadcast %268 : vector<2x1xi32> to vector<2x16xi32>
    %270 = arith.cmpi eq, %245, %269 : vector<2x16xi32>
    %cst_76 = arith.constant 1.000000e+00 : f32
    %271 = vector.broadcast %cst_76 : f32 to vector<2x16xf32>
    %272 = arith.select %270, %271, %258 : vector<2x16xi1>, vector<2x16xf32>
    %cst_77 = arith.constant 0xFF800000 : f32
    %273 = vector.broadcast %cst_77 : f32 to vector<2x16xf32>
    %274 = arith.select %270, %273, %260 : vector<2x16xi1>, vector<2x16xf32>
    %cst_78 = arith.constant dense<0xFF800000> : vector<2xf32>
    %275 = vector.multi_reduction <maximumf>, %274, %cst_78 [1] : vector<2x16xf32> to vector<2xf32>
    %276 = vector.shape_cast %275 : vector<2xf32> to vector<2x1xf32>
    %277 = vector.broadcast %276 : vector<2x1xf32> to vector<2x16xf32>
    %278 = arith.cmpf oeq, %274, %277 : vector<2x16xf32>
    %c16_i32_79 = arith.constant 16 : i32
    %279 = vector.broadcast %c16_i32_79 : i32 to vector<2x16xi32>
    %280 = arith.select %278, %245, %279 : vector<2x16xi1>, vector<2x16xi32>
    %cst_80 = arith.constant dense<2147483647> : vector<2xi32>
    %281 = vector.multi_reduction <minsi>, %280, %cst_80 [1] : vector<2x16xi32> to vector<2xi32>
    %282 = vector.shape_cast %281 : vector<2xi32> to vector<2x1xi32>
    %283 = vector.broadcast %282 : vector<2x1xi32> to vector<2x16xi32>
    %284 = arith.cmpi eq, %245, %283 : vector<2x16xi32>
    %cst_81 = arith.constant 1.000000e+00 : f32
    %285 = vector.broadcast %cst_81 : f32 to vector<2x16xf32>
    %286 = arith.select %284, %285, %272 : vector<2x16xi1>, vector<2x16xf32>
    %287 = arith.mulf %212, %244 : vector<2x16xf32>
    %cst_82 = arith.constant 1.000000e+00 : f32
    %288 = vector.broadcast %cst_82 : f32 to vector<2x16xf32>
    %289 = arith.subf %288, %286 : vector<2x16xf32>
    %290 = arith.mulf %287, %289 : vector<2x16xf32>
    %cst_83 = arith.constant dense<0.000000e+00> : vector<2xf32>
    %291 = vector.multi_reduction <add>, %290, %cst_83 [1] : vector<2x16xf32> to vector<2xf32>
    %292 = vector.shape_cast %291 : vector<2xf32> to vector<2x1xf32>
    %293 = vector.shape_cast %292 : vector<2x1xf32> to vector<1x2x1xf32>
    %cst_84 = arith.constant dense<0.000000e+00> : vector<1xf32>
    %294 = vector.multi_reduction <add>, %293, %cst_84 [1, 2] : vector<1x2x1xf32> to vector<1xf32>
    %295 = vector.shape_cast %294 : vector<1xf32> to vector<1x1x1xf32>
    %296 = vector.extract %295[0, 0, 0] : f32 from vector<1x1x1xf32>
    %cst_85 = arith.constant 2.000000e+00 : f32
    %297 = arith.divf %296, %cst_85 : f32
    %c0_86 = arith.constant 0 : index
    %c0_87 = arith.constant 0 : index
    %298 = memref.load %arg11[%c0_86, %c0_87] : memref<1x1xf32, #tpu.memory_space<smem>>
    memref.store %297, %arg11[%c0_86, %c0_87] : memref<1x1xf32, #tpu.memory_space<smem>>
    %cst_88 = arith.constant 3.000000e-01 : f32
    %299 = vector.broadcast %cst_88 : f32 to vector<2x16xf32>
    %300 = arith.cmpf ogt, %233, %299 : vector<2x16xf32>
    %301 = arith.extui %300 : vector<2x16xi1> to vector<2x16xi32>
    %c0_89 = arith.constant 0 : index
    %c0_90 = arith.constant 0 : index
    %302 = vector.load %arg12[%c0_89, %c0_90] : memref<2x16xi32, #tpu.memory_space<vmem>>, vector<2x16xi32>
    tpu.vector_store %arg12[%c0_89, %c0_90], %301 {strides = array<i32>} : memref<2x16xi32, #tpu.memory_space<vmem>>, vector<2x16xi32>,
    return
  }
}

</mosaic_0001>

<llo_original>
// kernel: law_model_forward.1
$region0: #{law_model_forward.1}
  #allocation0 [shape = 'u32[]', space=smem, size = 0x4, offset = 0x4, fixed_abs, tag = 'smem constant byte address 0x4 - core index']
  #allocation1 [shape = 'u32[144,128]{1,0:T(1,128)}', space=vmem, size = 0x12000, scoped, tag = 'internal scratch']
  %s0 = inlined_call_operand.vmem [shape: s32[64,1], index: 0, kind: input, shape index: {}]
  %s1 = inlined_call_operand.vmem [shape: f32[64,32], index: 1, kind: input, shape index: {}]
  %s2 = inlined_call_operand.vmem [shape: f32[32,128], index: 2, kind: input, shape index: {}]
  %s3 = inlined_call_operand.vmem [shape: f32[32,128], index: 3, kind: input, shape index: {}]
  %s4 = inlined_call_operand.vmem [shape: f32[1,128], index: 4, kind: input, shape index: {}]
  %s5 = inlined_call_operand.vmem [shape: f32[32,32], index: 5, kind: input, shape index: {}]
  %s6 = inlined_call_operand.vmem [shape: f32[1,32], index: 6, kind: input, shape index: {}]
  %s7 = inlined_call_operand.vmem [shape: f32[32,16], index: 7, kind: input, shape index: {}]
  %s8 = inlined_call_operand.vmem [shape: f32[1,16], index: 8, kind: input, shape index: {}]
  %s9 = inlined_call_operand.vmem [shape: f32[2,16], index: 9, kind: input, shape index: {}]
  %s10 = inlined_call_operand.hbm [shape: f32[1,1], index: 10, kind: output, shape index: {0}]
  %s11 = inlined_call_operand.hbm [shape: f32[1,1], index: 11, kind: output, shape index: {1}]
  %s12 = inlined_call_operand.hbm [shape: s32[2,16], index: 12, kind: output, shape index: {2}]
  %13 = xla_tuple %s10, %s11, %s12
  %s14 = sld [smem:[#allocation0]]
  $region66: #{law_model_forward.1} parent=0
    _
  %s16 = ssub.s32 1, %s14
  %s17 = scalar_select 0, %s16, %s14
  $region1: #{law_model_forward.1} parent=0
    #allocation2 [shape = 'u8[512]{0}', space=smem, size = 0x200, scoped, tag = 'output window, operand 0, single buffered']
    #allocation3 [shape = 's32[1]{0}', space=sflag, size = 0x4, scoped, tag = 'scoped memory for law_model_forward.1']
    #allocation4 [shape = 's32[1]{0}', space=sflag, size = 0x4, scoped, tag = 'scoped memory for law_model_forward.1']
    #allocation5 [shape = 'u8[512]{0}', space=smem, size = 0x200, scoped, tag = 'output window, operand 1, single buffered']
    #allocation6 [shape = 's32[1]{0}', space=sflag, size = 0x4, scoped, tag = 'scoped memory for law_model_forward.1']
    #allocation7 [shape = 'u8[1024]{0}', space=vmem, size = 0x400, scoped, tag = 'output window, operand 2, single buffered']
    %18 = vsyncpa [#allocation4], 0
    %19 = vsyncpa [#allocation6], 0
    %20 = vsyncpa [#allocation3], 0
    // Predicated region
    $region2: #{law_model_forward.1} parent=1 // pred_check
      _
    $region3: #{law_model_forward.1} parent=1 // pred_check_branch
      %22 = sbr.rel (0) target = $region5
    $region4: #{law_model_forward.1} parent=1 // pred_region
      _
    $region5: #{law_model_forward.1} parent=1 // pred_fallthru
      _
    // Predicated region
    $region6: #{law_model_forward.1} parent=1 // pred_check
      _
    $region7: #{law_model_forward.1} parent=1 // pred_check_branch
      %24 = sbr.rel (0) target = $region9
    $region8: #{law_model_forward.1} parent=1 // pred_region
      _
    $region9: #{law_model_forward.1} parent=1 // pred_fallthru
      _
    // Predicated region
    $region10: #{law_model_forward.1} parent=1 // pred_check
      _
    $region11: #{law_model_forward.1} parent=1 // pred_check_branch
      %26 = sbr.rel (0) target = $region13
    $region12: #{law_model_forward.1} parent=1 // pred_region
      _
    $region13: #{law_model_forward.1} parent=1 // pred_fallthru
      _
    // Predicated region
    $region14: #{law_model_forward.1} parent=1 // pred_check
      _
    $region15: #{law_model_forward.1} parent=1 // pred_check_branch
      %28 = sbr.rel (0) target = $region17
    $region16: #{law_model_forward.1} parent=1 // pred_region
      _
    $region17: #{law_model_forward.1} parent=1 // pred_fallthru
      _
    // Predicated region
    $region18: #{law_model_forward.1} parent=1 // pred_check
      _
    $region19: #{law_model_forward.1} parent=1 // pred_check_branch
      %30 = sbr.rel (0) target = $region21
    $region20: #{law_model_forward.1} parent=1 // pred_region
      _
    $region21: #{law_model_forward.1} parent=1 // pred_fallthru
      _
    // Predicated region
    $region22: #{law_model_forward.1} parent=1 // pred_check
      _
    $region23: #{law_model_forward.1} parent=1 // pred_check_branch
      %32 = sbr.rel (0) target = $region25
    $region24: #{law_model_forward.1} parent=1 // pred_region
      _
    $region25: #{law_model_forward.1} parent=1 // pred_fallthru
      _
    // Predicated region
    $region26: #{law_model_forward.1} parent=1 // pred_check
      _
    $region27: #{law_model_forward.1} parent=1 // pred_check_branch
      %34 = sbr.rel (0) target = $region29
    $region28: #{law_model_forward.1} parent=1 // pred_region
      _
    $region29: #{law_model_forward.1} parent=1 // pred_fallthru
      _
    // Predicated region
    $region30: #{law_model_forward.1} parent=1 // pred_check
      _
    $region31: #{law_model_forward.1} parent=1 // pred_check_branch
      %36 = sbr.rel (0) target = $region33
    $region32: #{law_model_forward.1} parent=1 // pred_region
      _
    $region33: #{law_model_forward.1} parent=1 // pred_fallthru
      _
    // Predicated region
    $region34: #{law_model_forward.1} parent=1 // pred_check
      _
    $region35: #{law_model_forward.1} parent=1 // pred_check_branch
      %38 = sbr.rel (0) target = $region37
    $region36: #{law_model_forward.1} parent=1 // pred_region
      _
    $region37: #{law_model_forward.1} parent=1 // pred_fallthru
      _
    // Predicated region
    $region38: #{law_model_forward.1} parent=1 // pred_check
      _
    $region39: #{law_model_forward.1} parent=1 // pred_check_branch
      %40 = sbr.rel (0) target = $region41
    $region40: #{law_model_forward.1} parent=1 // pred_region
      _
    $region41: #{law_model_forward.1} parent=1 // pred_fallthru
      _
    %v41 = vld [vmem:[%s1] sm:$0xff]
    %v42 = vld [vmem:[%s1 + $0x8] sm:$0xff]
    %v43 = vld [vmem:[%s1 + $0x10] sm:$0xff]
    %v44 = vld [vmem:[%s1 + $0x18] sm:$0xff]
    %v45 = vld [vmem:[%s1 + $0x20] sm:$0xff]
    %v46 = vld [vmem:[%s1 + $0x28] sm:$0xff]
    %v47 = vld [vmem:[%s1 + $0x30] sm:$0xff]
    %v48 = vld [vmem:[%s1 + $0x38] sm:$0xff]
    %v49 = vld [vmem:[%s2] sm:$0xff]
    %v50 = vld [vmem:[%s2 + $0x8] sm:$0xff]
    %v51 = vld [vmem:[%s2 + $0x10] sm:$0xff]
    %v52 = vld [vmem:[%s2 + $0x18] sm:$0xff]
    %vm53 = vcmask 261120
    %v55 = vsel %vm53, %v41, 0
    %v58 = vsel %vm53, %v42, 0
    %v61 = vsel %vm53, %v43, 0
    %v64 = vsel %vm53, %v44, 0
    %v67 = vsel %vm53, %v45, 0
    %v70 = vsel %vm53, %v46, 0
    %v73 = vsel %vm53, %v47, 0
    %v76 = vsel %vm53, %v48, 0
    %78 = vmatprep.subr.mxu0 0.0
    %79 = vmatpush1.msra.mxu0 0.0
    %80 = vmatprep.subr.mxu0 0.0
    %81 = vmatpush1.msra.mxu0 0.0
    %82 = vmatprep.subr.mxu0 0.0
    %83 = vmatpush1.msra.mxu0 0.0
    %84 = vmatprep.subr.mxu0 0.0
    %85 = vmatpush1.msra.mxu0 0.0
    %86 = vmatprep.subr.mxu0 0.0
    %87 = vmatpush1.msra.mxu0 0.0
    %88 = vmatprep.subr.mxu0 0.0
    %89 = vmatpush1.msra.mxu0 0.0
    %90 = vmatprep.subr.mxu0 0.0
    %91 = vmatpush1.msra.mxu0 0.0
    %92 = vmatprep.subr.mxu0 0.0
    %93 = vmatpush1.msra.mxu0 0.0
    %94 = vmatprep.subr.mxu0 0.0
    %95 = vmatpush1.msra.mxu0 0.0
    %96 = vmatprep.subr.mxu0 0.0
    %97 = vmatpush1.msra.mxu0 0.0
    %98 = vmatprep.subr.mxu0 0.0
    %99 = vmatpush1.msra.mxu0 0.0
    %100 = vmatprep.subr.mxu0 0.0
    %101 = vmatpush1.msra.mxu0 0.0
    %102 = vmatprep.subr.mxu0 0.0
    %103 = vmatpush1.msra.mxu0 %v52
    %104 = vmatprep.subr.mxu0 0.0
    %105 = vmatpush1.msra.mxu0 %v51
    %106 = vmatprep.subr.mxu0 0.0
    %107 = vmatpush1.msra.mxu0 %v50
    %108 = vmatprep.subr.mxu0 0.0
    %109 = vmatpush1.msra.mxu0 %v49
    %110 = vmatprep.subr.mxu0 0.0
    %111 = vmatpush2.msra.mxu0 0.0
    %112 = vmatprep.subr.mxu0 0.0
    %113 = vmatpush2.msra.mxu0 0.0
    %114 = vmatprep.subr.mxu0 0.0
    %115 = vmatpush2.msra.mxu0 0.0
    %116 = vmatprep.subr.mxu0 0.0
    %117 = vmatpush2.msra.mxu0 0.0
    %118 = vmatprep.subr.mxu0 0.0
    %119 = vmatpush2.msra.mxu0 0.0
    %120 = vmatprep.subr.mxu0 0.0
    %121 = vmatpush2.msra.mxu0 0.0
    %122 = vmatprep.subr.mxu0 0.0
    %123 = vmatpush2.msra.mxu0 0.0
    %124 = vmatprep.subr.mxu0 0.0
    %125 = vmatpush2.msra.mxu0 0.0
    %126 = vmatprep.subr.mxu0 0.0
    %127 = vmatpush2.msra.mxu0 0.0
    %128 = vmatprep.subr.mxu0 0.0
    %129 = vmatpush2.msra.mxu0 0.0
    %130 = vmatprep.subr.mxu0 0.0
    %131 = vmatpush2.msra.mxu0 0.0
    %132 = vmatprep.subr.mxu0 0.0
    %133 = vmatpush2.msra.mxu0 0.0
    %134 = vmatprep.subr.mxu0 0.0
    %135 = vmatpush2.msra.mxu0 0.0
    %136 = vmatprep.subr.mxu0 0.0
    %137 = vmatpush2.msra.mxu0 0.0
    %138 = vmatprep.subr.mxu0 0.0
    %139 = vmatpush2.msra.mxu0 0.0
    %140 = vmatprep.subr.mxu0 0.0
    %141 = vmatpush2.msra.mxu0 0.0
    %142 = vmatprep.mubr.f32.mxu0 0.0
    %143 = vmatmul.mubr.f32.gmra.mxu0 %v55
    %v144 = vpop.f32.mrf.mxu0
    %v145 = vadd.f32 0.0, %v144
    %v146 = vpop.f32.mrf.mxu0
    %147 = vmatprep.mubr.f32.mxu0 0.0
    %148 = vmatmul.mubr.f32.gmra.mxu0 %v58
    %v149 = vpop.f32.mrf.mxu0
    %v150 = vadd.f32 0.0, %v149
    %v151 = vpop.f32.mrf.mxu0
    %152 = vmatprep.mubr.f32.mxu0 0.0
    %153 = vmatmul.mubr.f32.gmra.mxu0 %v61
    %v154 = vpop.f32.mrf.mxu0
    %v155 = vadd.f32 0.0, %v154
    %v156 = vpop.f32.mrf.mxu0
    %157 = vmatprep.mubr.f32.mxu0 0.0
    %158 = vmatmul.mubr.f32.gmra.mxu0 %v64
    %v159 = vpop.f32.mrf.mxu0
    %v160 = vadd.f32 0.0, %v159
    %v161 = vpop.f32.mrf.mxu0
    %162 = vmatprep.mubr.f32.mxu0 0.0
    %163 = vmatmul.mubr.f32.gmra.mxu0 %v67
    %v164 = vpop.f32.mrf.mxu0
    %v165 = vadd.f32 0.0, %v164
    %v166 = vpop.f32.mrf.mxu0
    %167 = vmatprep.mubr.f32.mxu0 0.0
    %168 = vmatmul.mubr.f32.gmra.mxu0 %v70
    %v169 = vpop.f32.mrf.mxu0
    %v170 = vadd.f32 0.0, %v169
    %v171 = vpop.f32.mrf.mxu0
    %172 = vmatprep.mubr.f32.mxu0 0.0
    %173 = vmatmul.mubr.f32.gmra.mxu0 %v73
    %v174 = vpop.f32.mrf.mxu0
    %v175 = vadd.f32 0.0, %v174
    %v176 = vpop.f32.mrf.mxu0
    %177 = vmatprep.mubr.f32.mxu0 0.0
    %178 = vmatmul.mubr.f32.gmra.mxu0 %v76
    %v179 = vpop.f32.mrf.mxu0
    %v180 = vadd.f32 0.0, %v179
    %v181 = vpop.f32.mrf.mxu0
    %182 = vdwg.mxu0
    %v183 = vlaneseq
    %v184 = vand.u32 %v183, 127
    %v185 = vld [vmem:[%s0] sm:$0xff]
    %v186 = vld [vmem:[%s0 + $0x8] sm:$0xff]
    %v187 = vld [vmem:[%s0 + $0x10] sm:$0xff]
    %v188 = vld [vmem:[%s0 + $0x18] sm:$0xff]
    %v189 = vld [vmem:[%s0 + $0x20] sm:$0xff]
    %v190 = vld [vmem:[%s0 + $0x28] sm:$0xff]
    %v191 = vld [vmem:[%s0 + $0x30] sm:$0xff]
    %v192 = vld [vmem:[%s0 + $0x38] sm:$0xff]
    %193 = vset.pattern.permute.xlu0 0
    %194 = vperm.xlu0 %193, %v185
    %v195 = vpop.permute.xlu0 %194
    %196 = vset.pattern.permute.xlu0 0
    %197 = vperm.xlu0 %196, %v186
    %v198 = vpop.permute.xlu0 %197
    %199 = vset.pattern.permute.xlu0 0
    %200 = vperm.xlu0 %199, %v187
    %v201 = vpop.permute.xlu0 %200
    %202 = vset.pattern.permute.xlu0 0
    %203 = vperm.xlu0 %202, %v188
    %v204 = vpop.permute.xlu0 %203
    %205 = vset.pattern.permute.xlu0 0
    %206 = vperm.xlu0 %205, %v189
    %v207 = vpop.permute.xlu0 %206
    %208 = vset.pattern.permute.xlu0 0
    %209 = vperm.xlu0 %208, %v190
    %v210 = vpop.permute.xlu0 %209
    %211 = vset.pattern.permute.xlu0 0
    %212 = vperm.xlu0 %211, %v191
    %v213 = vpop.permute.xlu0 %212
    %214 = vset.pattern.permute.xlu0 0
    %215 = vperm.xlu0 %214, %v192
    %v216 = vpop.permute.xlu0 %215
    %vm217 = vcmp.eq.s32.totalorder %v184, %v195
    %vm218 = vcmp.eq.s32.totalorder %v184, %v198
    %vm219 = vcmp.eq.s32.totalorder %v184, %v201
    %vm220 = vcmp.eq.s32.totalorder %v184, %v204
    %vm221 = vcmp.eq.s32.totalorder %v184, %v207
    %vm222 = vcmp.eq.s32.totalorder %v184, %v210
    %vm223 = vcmp.eq.s32.totalorder %v184, %v213
    %vm224 = vcmp.eq.s32.totalorder %v184, %v216
    %v225 = vsel %vm217, 1, 0
    %v226 = vsel %vm218, 1, 0
    %v227 = vsel %vm219, 1, 0
    %v228 = vsel %vm220, 1, 0
    %v229 = vsel %vm221, 1, 0
    %v230 = vsel %vm222, 1, 0
    %v231 = vsel %vm223, 1, 0
    %v232 = vsel %vm224, 1, 0
    %v233 = vcvt.s32.f32 %v225
    %v234 = vcvt.s32.f32 %v226
    %v235 = vcvt.s32.f32 %v227
    %v236 = vcvt.s32.f32 %v228
    %v237 = vcvt.s32.f32 %v229
    %v238 = vcvt.s32.f32 %v230
    %v239 = vcvt.s32.f32 %v231
    %v240 = vcvt.s32.f32 %v232
    %v241 = vld [vmem:[%s4] sm:$0x1]
    %v243 = vlaneseq
    %v244 = vshrl.u32 %v243, 7
    %v245 = vsub.s32 0, %v244
    %v246 = vrot.slane %v241, %v245
    %vm248 = vcmask 523264
    %v250 = vsel %vm248, %v233, 0
    %v253 = vsel %vm248, %v234, 0
    %v256 = vsel %vm248, %v235, 0
    %v259 = vsel %vm248, %v236, 0
    %v262 = vsel %vm248, %v237, 0
    %v265 = vsel %vm248, %v238, 0
    %v268 = vsel %vm248, %v239, 0
    %v271 = vsel %vm248, %v240, 0
    %273 = vmatprep.subr.mxu0 0.0
    %274 = vmatpush1.msra.mxu0 0.0
    %275 = vmatprep.subr.mxu0 0.0
    %276 = vmatpush1.msra.mxu0 0.0
    %277 = vmatprep.subr.mxu0 0.0
    %278 = vmatpush1.msra.mxu0 0.0
    %279 = vmatprep.subr.mxu0 0.0
    %280 = vmatpush1.msra.mxu0 0.0
    %281 = vmatprep.subr.mxu0 0.0
    %282 = vmatpush1.msra.mxu0 0.0
    %283 = vmatprep.subr.mxu0 0.0
    %284 = vmatpush1.msra.mxu0 0.0
    %285 = vmatprep.subr.mxu0 0.0
    %286 = vmatpush1.msra.mxu0 0.0
    %287 = vmatprep.subr.mxu0 0.0
    %288 = vmatpush1.msra.mxu0 0.0
    %289 = vmatprep.subr.mxu0 0.0
    %290 = vmatpush1.msra.mxu0 %v180
    %291 = vmatprep.subr.mxu0 0.0
    %292 = vmatpush1.msra.mxu0 %v175
    %293 = vmatprep.subr.mxu0 0.0
    %294 = vmatpush1.msra.mxu0 %v170
    %295 = vmatprep.subr.mxu0 0.0
    %296 = vmatpush1.msra.mxu0 %v165
    %297 = vmatprep.subr.mxu0 0.0
    %298 = vmatpush1.msra.mxu0 %v160
    %299 = vmatprep.subr.mxu0 0.0
    %300 = vmatpush1.msra.mxu0 %v155
    %301 = vmatprep.subr.mxu0 0.0
    %302 = vmatpush1.msra.mxu0 %v150
    %303 = vmatprep.subr.mxu0 0.0
    %304 = vmatpush1.msra.mxu0 %v145
    %305 = vmatprep.subr.mxu0 0.0
    %306 = vmatpush2.msra.mxu0 0.0
    %307 = vmatprep.subr.mxu0 0.0
    %308 = vmatpush2.msra.mxu0 0.0
    %309 = vmatprep.subr.mxu0 0.0
    %310 = vmatpush2.msra.mxu0 0.0
    %311 = vmatprep.subr.mxu0 0.0
    %312 = vmatpush2.msra.mxu0 0.0
    %313 = vmatprep.subr.mxu0 0.0
    %314 = vmatpush2.msra.mxu0 0.0
    %315 = vmatprep.subr.mxu0 0.0
    %316 = vmatpush2.msra.mxu0 0.0
    %317 = vmatprep.subr.mxu0 0.0
    %318 = vmatpush2.msra.mxu0 0.0
    %319 = vmatprep.subr.mxu0 0.0
    %320 = vmatpush2.msra.mxu0 0.0
    %321 = vmatprep.subr.mxu0 0.0
    %322 = vmatpush2.msra.mxu0 0.0
    %323 = vmatprep.subr.mxu0 0.0
    %324 = vmatpush2.msra.mxu0 0.0
    %325 = vmatprep.subr.mxu0 0.0
    %326 = vmatpush2.msra.mxu0 0.0
    %327 = vmatprep.subr.mxu0 0.0
    %328 = vmatpush2.msra.mxu0 0.0
    %329 = vmatprep.subr.mxu0 0.0
    %330 = vmatpush2.msra.mxu0 0.0
    %331 = vmatprep.subr.mxu0 0.0
    %332 = vmatpush2.msra.mxu0 0.0
    %333 = vmatprep.subr.mxu0 0.0
    %334 = vmatpush2.msra.mxu0 0.0
    %335 = vmatprep.subr.mxu0 0.0
    %336 = vmatpush2.msra.mxu0 0.0
    %337 = vmatprep.mubr.f32.mxu0 0.0
    %338 = vmatmul.mubr.f32.gmra.mxu0 %v250
    %v339 = vpop.f32.mrf.mxu0
    %v340 = vadd.f32 %v246, %v339
    %v341 = vpop.f32.mrf.mxu0
    %342 = vmatprep.mubr.f32.mxu0 0.0
    %343 = vmatmul.mubr.f32.gmra.mxu0 %v253
    %v344 = vpop.f32.mrf.mxu0
    %v345 = vadd.f32 %v246, %v344
    %v346 = vpop.f32.mrf.mxu0
    %347 = vmatprep.mubr.f32.mxu0 0.0
    %348 = vmatmul.mubr.f32.gmra.mxu0 %v256
    %v349 = vpop.f32.mrf.mxu0
    %v350 = vadd.f32 %v246, %v349
    %v351 = vpop.f32.mrf.mxu0
    %352 = vmatprep.mubr.f32.mxu0 0.0
    %353 = vmatmul.mubr.f32.gmra.mxu0 %v259
    %v354 = vpop.f32.mrf.mxu0
    %v355 = vadd.f32 %v246, %v354
    %v356 = vpop.f32.mrf.mxu0
    %357 = vmatprep.mubr.f32.mxu0 0.0
    %358 = vmatmul.mubr.f32.gmra.mxu0 %v262
    %v359 = vpop.f32.mrf.mxu0
    %v360 = vadd.f32 %v246, %v359
    %v361 = vpop.f32.mrf.mxu0
    %362 = vmatprep.mubr.f32.mxu0 0.0
    %363 = vmatmul.mubr.f32.gmra.mxu0 %v265
    %v364 = vpop.f32.mrf.mxu0
    %v365 = vadd.f32 %v246, %v364
    %v366 = vpop.f32.mrf.mxu0
    %367 = vmatprep.mubr.f32.mxu0 0.0
    %368 = vmatmul.mubr.f32.gmra.mxu0 %v268
    %v369 = vpop.f32.mrf.mxu0
    %v370 = vadd.f32 %v246, %v369
    %v371 = vpop.f32.mrf.mxu0
    %372 = vmatprep.mubr.f32.mxu0 0.0
    %373 = vmatmul.mubr.f32.gmra.mxu0 %v271
    %v374 = vpop.f32.mrf.mxu0
    %v375 = vadd.f32 %v246, %v374
    %v376 = vpop.f32.mrf.mxu0
    %377 = vdwg.mxu0
    %v378 = vld [vmem:[%s3] sm:$0xff]
    %v379 = vld [vmem:[%s3 + $0x8] sm:$0xff]
    %v380 = vld [vmem:[%s3 + $0x10] sm:$0xff]
    %v381 = vld [vmem:[%s3 + $0x18] sm:$0xff]
    %vm382 = vcmp.ge.s32.totalorder %v184, 64
    %vm383 = vcmp.lt.s32.totalorder %v184, 96
    %vm384 = vmand %vm382, %vm383
    %v386 = vsel %vm53, 0.0, 0
    %388 = vmatprep.subr.mxu0 0.0
    %389 = vmatpush1.msra.mxu0 0.0
    %390 = vmatprep.subr.mxu0 0.0
    %391 = vmatpush1.msra.mxu0 0.0
    %392 = vmatprep.subr.mxu0 0.0
    %393 = vmatpush1.msra.mxu0 0.0
    %394 = vmatprep.subr.mxu0 0.0
    %395 = vmatpush1.msra.mxu0 0.0
    %396 = vmatprep.subr.mxu0 0.0
    %397 = vmatpush1.msra.mxu0 0.0
    %398 = vmatprep.subr.mxu0 0.0
    %399 = vmatpush1.msra.mxu0 0.0
    %400 = vmatprep.subr.mxu0 0.0
    %401 = vmatpush1.msra.mxu0 0.0
    %402 = vmatprep.subr.mxu0 0.0
    %403 = vmatpush1.msra.mxu0 0.0
    %404 = vmatprep.subr.mxu0 0.0
    %405 = vmatpush1.msra.mxu0 0.0
    %406 = vmatprep.subr.mxu0 0.0
    %407 = vmatpush1.msra.mxu0 0.0
    %408 = vmatprep.subr.mxu0 0.0
    %409 = vmatpush1.msra.mxu0 0.0
    %410 = vmatprep.subr.mxu0 0.0
    %411 = vmatpush1.msra.mxu0 0.0
    %412 = vmatprep.subr.mxu0 0.0
    %413 = vmatpush1.msra.mxu0 %v381
    %414 = vmatprep.subr.mxu0 0.0
    %415 = vmatpush1.msra.mxu0 %v380
    %416 = vmatprep.subr.mxu0 0.0
    %417 = vmatpush1.msra.mxu0 %v379
    %418 = vmatprep.subr.mxu0 0.0
    %419 = vmatpush1.msra.mxu0 %v378
    %420 = vmatprep.subr.mxu0 0.0
    %421 = vmatpush2.msra.mxu0 0.0
    %422 = vmatprep.subr.mxu0 0.0
    %423 = vmatpush2.msra.mxu0 0.0
    %424 = vmatprep.subr.mxu0 0.0
    %425 = vmatpush2.msra.mxu0 0.0
    %426 = vmatprep.subr.mxu0 0.0
    %427 = vmatpush2.msra.mxu0 0.0
    %428 = vmatprep.subr.mxu0 0.0
    %429 = vmatpush2.msra.mxu0 0.0
    %430 = vmatprep.subr.mxu0 0.0
    %431 = vmatpush2.msra.mxu0 0.0
    %432 = vmatprep.subr.mxu0 0.0
    %433 = vmatpush2.msra.mxu0 0.0
    %434 = vmatprep.subr.mxu0 0.0
    %435 = vmatpush2.msra.mxu0 0.0
    %436 = vmatprep.subr.mxu0 0.0
    %437 = vmatpush2.msra.mxu0 0.0
    %438 = vmatprep.subr.mxu0 0.0
    %439 = vmatpush2.msra.mxu0 0.0
    %440 = vmatprep.subr.mxu0 0.0
    %441 = vmatpush2.msra.mxu0 0.0
    %442 = vmatprep.subr.mxu0 0.0
    %443 = vmatpush2.msra.mxu0 0.0
    %444 = vmatprep.subr.mxu0 0.0
    %445 = vmatpush2.msra.mxu0 0.0
    %446 = vmatprep.subr.mxu0 0.0
    %447 = vmatpush2.msra.mxu0 0.0
    %448 = vmatprep.subr.mxu0 0.0
    %449 = vmatpush2.msra.mxu0 0.0
    %450 = vmatprep.subr.mxu0 0.0
    %451 = vmatpush2.msra.mxu0 0.0
    %452 = vmatprep.mubr.f32.mxu0 0.0
    %453 = vmatmul.mubr.f32.gmra.mxu0 %v386
    %v454 = vpop.f32.mrf.mxu0
    %v455 = vadd.f32 0.0, %v454
    %v456 = vpop.f32.mrf.mxu0
    %457 = vdwg.mxu0
    %v458 = vadd.f32 %v340, %v455
    %v459 = vmul.f32 %v458, 0.5
    %v460 = vsel %vm384, %v458, %v459
    %v461 = vtanh.pop %v460
    %v462 = vmul.f32 %v461, 0.5
    %v463 = vadd.f32 %v462, 0.5
    %v464 = vsel %vm384, %v461, %v463
    %v465 = vmul.f32 %v464, 0.0
    %467 = vrot.lane.b32.xlu0 %v464, 64
    %v468 = vpop.permute.xlu0 %467
    %v470 = vmul.f32 %v464, %v468
    %472 = vrot.lane.b32.xlu0 %v470, 32
    %v473 = vpop.permute.xlu0 %472
    %v475 = vadd.f32 %v465, %v473
    %v476 = vtanh.pop %v475
    %478 = vrot.lane.b32.xlu0 %v476, 64
    %v479 = vpop.permute.xlu0 %478
    %v481 = vmul.f32 %v464, %v479
    %483 = vrot.lane.b32.xlu0 %v481, 32
    %v484 = vpop.permute.xlu0 %483
    %v485 = vsel %vm53, %v484, 0
    %487 = vmatprep.subr.mxu0 0.0
    %488 = vmatpush1.msra.mxu0 0.0
    %489 = vmatprep.subr.mxu0 0.0
    %490 = vmatpush1.msra.mxu0 0.0
    %491 = vmatprep.subr.mxu0 0.0
    %492 = vmatpush1.msra.mxu0 0.0
    %493 = vmatprep.subr.mxu0 0.0
    %494 = vmatpush1.msra.mxu0 0.0
    %495 = vmatprep.subr.mxu0 0.0
    %496 = vmatpush1.msra.mxu0 0.0
    %497 = vmatprep.subr.mxu0 0.0
    %498 = vmatpush1.msra.mxu0 0.0
    %499 = vmatprep.subr.mxu0 0.0
    %500 = vmatpush1.msra.mxu0 0.0
    %501 = vmatprep.subr.mxu0 0.0
    %502 = vmatpush1.msra.mxu0 0.0
    %503 = vmatprep.subr.mxu0 0.0
    %504 = vmatpush1.msra.mxu0 0.0
    %505 = vmatprep.subr.mxu0 0.0
    %506 = vmatpush1.msra.mxu0 0.0
    %507 = vmatprep.subr.mxu0 0.0
    %508 = vmatpush1.msra.mxu0 0.0
    %509 = vmatprep.subr.mxu0 0.0
    %510 = vmatpush1.msra.mxu0 0.0
    %511 = vmatprep.subr.mxu0 0.0
    %512 = vmatpush1.msra.mxu0 %v381
    %513 = vmatprep.subr.mxu0 0.0
    %514 = vmatpush1.msra.mxu0 %v380
    %515 = vmatprep.subr.mxu0 0.0
    %516 = vmatpush1.msra.mxu0 %v379
    %517 = vmatprep.subr.mxu0 0.0
    %518 = vmatpush1.msra.mxu0 %v378
    %519 = vmatprep.subr.mxu0 0.0
    %520 = vmatpush2.msra.mxu0 0.0
    %521 = vmatprep.subr.mxu0 0.0
    %522 = vmatpush2.msra.mxu0 0.0
    %523 = vmatprep.subr.mxu0 0.0
    %524 = vmatpush2.msra.mxu0 0.0
    %525 = vmatprep.subr.mxu0 0.0
    %526 = vmatpush2.msra.mxu0 0.0
    %527 = vmatprep.subr.mxu0 0.0
    %528 = vmatpush2.msra.mxu0 0.0
    %529 = vmatprep.subr.mxu0 0.0
    %530 = vmatpush2.msra.mxu0 0.0
    %531 = vmatprep.subr.mxu0 0.0
    %532 = vmatpush2.msra.mxu0 0.0
    %533 = vmatprep.subr.mxu0 0.0
    %534 = vmatpush2.msra.mxu0 0.0
    %535 = vmatprep.subr.mxu0 0.0
    %536 = vmatpush2.msra.mxu0 0.0
    %537 = vmatprep.subr.mxu0 0.0
    %538 = vmatpush2.msra.mxu0 0.0
    %539 = vmatprep.subr.mxu0 0.0
    %540 = vmatpush2.msra.mxu0 0.0
    %541 = vmatprep.subr.mxu0 0.0
    %542 = vmatpush2.msra.mxu0 0.0
    %543 = vmatprep.subr.mxu0 0.0
    %544 = vmatpush2.msra.mxu0 0.0
    %545 = vmatprep.subr.mxu0 0.0
    %546 = vmatpush2.msra.mxu0 0.0
    %547 = vmatprep.subr.mxu0 0.0
    %548 = vmatpush2.msra.mxu0 0.0
    %549 = vmatprep.subr.mxu0 0.0
    %550 = vmatpush2.msra.mxu0 0.0
    %551 = vmatprep.mubr.f32.mxu0 0.0
    %552 = vmatmul.mubr.f32.gmra.mxu0 %v485
    %v553 = vpop.f32.mrf.mxu0
    %v554 = vadd.f32 0.0, %v553
    %v555 = vpop.f32.mrf.mxu0
    %556 = vdwg.mxu0
    %v557 = vadd.f32 %v345, %v554
    %v558 = vmul.f32 %v557, 0.5
    %v559 = vsel %vm384, %v557, %v558
    %v560 = vtanh.pop %v559
    %v561 = vmul.f32 %v560, 0.5
    %v562 = vadd.f32 %v561, 0.5
    %v563 = vsel %vm384, %v560, %v562
    %v564 = vmul.f32 %v563, %v475
    %566 = vrot.lane.b32.xlu0 %v563, 64
    %v567 = vpop.permute.xlu0 %566
    %v569 = vmul.f32 %v563, %v567
    %571 = vrot.lane.b32.xlu0 %v569, 32
    %v572 = vpop.permute.xlu0 %571
    %v574 = vadd.f32 %v564, %v572
    %v575 = vtanh.pop %v574
    %577 = vrot.lane.b32.xlu0 %v575, 64
    %v578 = vpop.permute.xlu0 %577
    %v580 = vmul.f32 %v563, %v578
    %v581 = vmax.f32 %v481, %v580
    %583 = vrot.lane.b32.xlu0 %v580, 32
    %v584 = vpop.permute.xlu0 %583
    %v585 = vsel %vm53, %v584, 0
    %587 = vmatprep.subr.mxu0 0.0
    %588 = vmatpush1.msra.mxu0 0.0
    %589 = vmatprep.subr.mxu0 0.0
    %590 = vmatpush1.msra.mxu0 0.0
    %591 = vmatprep.subr.mxu0 0.0
    %592 = vmatpush1.msra.mxu0 0.0
    %593 = vmatprep.subr.mxu0 0.0
    %594 = vmatpush1.msra.mxu0 0.0
    %595 = vmatprep.subr.mxu0 0.0
    %596 = vmatpush1.msra.mxu0 0.0
    %597 = vmatprep.subr.mxu0 0.0
    %598 = vmatpush1.msra.mxu0 0.0
    %599 = vmatprep.subr.mxu0 0.0
    %600 = vmatpush1.msra.mxu0 0.0
    %601 = vmatprep.subr.mxu0 0.0
    %602 = vmatpush1.msra.mxu0 0.0
    %603 = vmatprep.subr.mxu0 0.0
    %604 = vmatpush1.msra.mxu0 0.0
    %605 = vmatprep.subr.mxu0 0.0
    %606 = vmatpush1.msra.mxu0 0.0
    %607 = vmatprep.subr.mxu0 0.0
    %608 = vmatpush1.msra.mxu0 0.0
    %609 = vmatprep.subr.mxu0 0.0
    %610 = vmatpush1.msra.mxu0 0.0
    %611 = vmatprep.subr.mxu0 0.0
    %612 = vmatpush1.msra.mxu0 %v381
    %613 = vmatprep.subr.mxu0 0.0
    %614 = vmatpush1.msra.mxu0 %v380
    %615 = vmatprep.subr.mxu0 0.0
    %616 = vmatpush1.msra.mxu0 %v379
    %617 = vmatprep.subr.mxu0 0.0
    %618 = vmatpush1.msra.mxu0 %v378
    %619 = vmatprep.subr.mxu0 0.0
    %620 = vmatpush2.msra.mxu0 0.0
    %621 = vmatprep.subr.mxu0 0.0
    %622 = vmatpush2.msra.mxu0 0.0
    %623 = vmatprep.subr.mxu0 0.0
    %624 = vmatpush2.msra.mxu0 0.0
    %625 = vmatprep.subr.mxu0 0.0
    %626 = vmatpush2.msra.mxu0 0.0
    %627 = vmatprep.subr.mxu0 0.0
    %628 = vmatpush2.msra.mxu0 0.0
    %629 = vmatprep.subr.mxu0 0.0
    %630 = vmatpush2.msra.mxu0 0.0
    %631 = vmatprep.subr.mxu0 0.0
    %632 = vmatpush2.msra.mxu0 0.0
    %633 = vmatprep.subr.mxu0 0.0
    %634 = vmatpush2.msra.mxu0 0.0
    %635 = vmatprep.subr.mxu0 0.0
    %636 = vmatpush2.msra.mxu0 0.0
    %637 = vmatprep.subr.mxu0 0.0
    %638 = vmatpush2.msra.mxu0 0.0
    %639 = vmatprep.subr.mxu0 0.0
    %640 = vmatpush2.msra.mxu0 0.0
    %641 = vmatprep.subr.mxu0 0.0
    %642 = vmatpush2.msra.mxu0 0.0
    %643 = vmatprep.subr.mxu0 0.0
    %644 = vmatpush2.msra.mxu0 0.0
    %645 = vmatprep.subr.mxu0 0.0
    %646 = vmatpush2.msra.mxu0 0.0
    %647 = vmatprep.subr.mxu0 0.0
    %648 = vmatpush2.msra.mxu0 0.0
    %649 = vmatprep.subr.mxu0 0.0
    %650 = vmatpush2.msra.mxu0 0.0
    %651 = vmatprep.mubr.f32.mxu0 0.0
    %652 = vmatmul.mubr.f32.gmra.mxu0 %v585
    %v653 = vpop.f32.mrf.mxu0
    %v654 = vadd.f32 0.0, %v653
    %v655 = vpop.f32.mrf.mxu0
    %656 = vdwg.mxu0
    %v657 = vadd.f32 %v350, %v654
    %v658 = vmul.f32 %v657, 0.5
    %v659 = vsel %vm384, %v657, %v658
    %v660 = vtanh.pop %v659
    %v661 = vmul.f32 %v660, 0.5
    %v662 = vadd.f32 %v661, 0.5
    %v663 = vsel %vm384, %v660, %v662
    %v664 = vmul.f32 %v663, %v574
    %666 = vrot.lane.b32.xlu0 %v663, 64
    %v667 = vpop.permute.xlu0 %666
    %v669 = vmul.f32 %v663, %v667
    %671 = vrot.lane.b32.xlu0 %v669, 32
    %v672 = vpop.permute.xlu0 %671
    %v674 = vadd.f32 %v664, %v672
    %v675 = vtanh.pop %v674
    %677 = vrot.lane.b32.xlu0 %v675, 64
    %v678 = vpop.permute.xlu0 %677
    %v680 = vmul.f32 %v663, %v678
    %v681 = vmax.f32 %v581, %v680
    %683 = vrot.lane.b32.xlu0 %v680, 32
    %v684 = vpop.permute.xlu0 %683
    %v685 = vsel %vm53, %v684, 0
    %687 = vmatprep.subr.mxu0 0.0
    %688 = vmatpush1.msra.mxu0 0.0
    %689 = vmatprep.subr.mxu0 0.0
    %690 = vmatpush1.msra.mxu0 0.0
    %691 = vmatprep.subr.mxu0 0.0
    %692 = vmatpush1.msra.mxu0 0.0
    %693 = vmatprep.subr.mxu0 0.0
    %694 = vmatpush1.msra.mxu0 0.0
    %695 = vmatprep.subr.mxu0 0.0
    %696 = vmatpush1.msra.mxu0 0.0
    %697 = vmatprep.subr.mxu0 0.0
    %698 = vmatpush1.msra.mxu0 0.0
    %699 = vmatprep.subr.mxu0 0.0
    %700 = vmatpush1.msra.mxu0 0.0
    %701 = vmatprep.subr.mxu0 0.0
    %702 = vmatpush1.msra.mxu0 0.0
    %703 = vmatprep.subr.mxu0 0.0
    %704 = vmatpush1.msra.mxu0 0.0
    %705 = vmatprep.subr.mxu0 0.0
    %706 = vmatpush1.msra.mxu0 0.0
    %707 = vmatprep.subr.mxu0 0.0
    %708 = vmatpush1.msra.mxu0 0.0
    %709 = vmatprep.subr.mxu0 0.0
    %710 = vmatpush1.msra.mxu0 0.0
    %711 = vmatprep.subr.mxu0 0.0
    %712 = vmatpush1.msra.mxu0 %v381
    %713 = vmatprep.subr.mxu0 0.0
    %714 = vmatpush1.msra.mxu0 %v380
    %715 = vmatprep.subr.mxu0 0.0
    %716 = vmatpush1.msra.mxu0 %v379
    %717 = vmatprep.subr.mxu0 0.0
    %718 = vmatpush1.msra.mxu0 %v378
    %719 = vmatprep.subr.mxu0 0.0
    %720 = vmatpush2.msra.mxu0 0.0
    %721 = vmatprep.subr.mxu0 0.0
    %722 = vmatpush2.msra.mxu0 0.0
    %723 = vmatprep.subr.mxu0 0.0
    %724 = vmatpush2.msra.mxu0 0.0
    %725 = vmatprep.subr.mxu0 0.0
    %726 = vmatpush2.msra.mxu0 0.0
    %727 = vmatprep.subr.mxu0 0.0
    %728 = vmatpush2.msra.mxu0 0.0
    %729 = vmatprep.subr.mxu0 0.0
    %730 = vmatpush2.msra.mxu0 0.0
    %731 = vmatprep.subr.mxu0 0.0
    %732 = vmatpush2.msra.mxu0 0.0
    %733 = vmatprep.subr.mxu0 0.0
    %734 = vmatpush2.msra.mxu0 0.0
    %735 = vmatprep.subr.mxu0 0.0
    %736 = vmatpush2.msra.mxu0 0.0
    %737 = vmatprep.subr.mxu0 0.0
    %738 = vmatpush2.msra.mxu0 0.0
    %739 = vmatprep.subr.mxu0 0.0
    %740 = vmatpush2.msra.mxu0 0.0
    %741 = vmatprep.subr.mxu0 0.0
    %742 = vmatpush2.msra.mxu0 0.0
    %743 = vmatprep.subr.mxu0 0.0
    %744 = vmatpush2.msra.mxu0 0.0
    %745 = vmatprep.subr.mxu0 0.0
    %746 = vmatpush2.msra.mxu0 0.0
    %747 = vmatprep.subr.mxu0 0.0
    %748 = vmatpush2.msra.mxu0 0.0
    %749 = vmatprep.subr.mxu0 0.0
    %750 = vmatpush2.msra.mxu0 0.0
    %751 = vmatprep.mubr.f32.mxu0 0.0
    %752 = vmatmul.mubr.f32.gmra.mxu0 %v685
    %v753 = vpop.f32.mrf.mxu0
    %v754 = vadd.f32 0.0, %v753
    %v755 = vpop.f32.mrf.mxu0
    %756 = vdwg.mxu0
    %v757 = vadd.f32 %v355, %v754
    %v758 = vmul.f32 %v757, 0.5
    %v759 = vsel %vm384, %v757, %v758
    %v760 = vtanh.pop %v759
    %v761 = vmul.f32 %v760, 0.5
    %v762 = vadd.f32 %v761, 0.5
    %v763 = vsel %vm384, %v760, %v762
    %v764 = vmul.f32 %v763, %v674
    %766 = vrot.lane.b32.xlu0 %v763, 64
    %v767 = vpop.permute.xlu0 %766
    %v769 = vmul.f32 %v763, %v767
    %771 = vrot.lane.b32.xlu0 %v769, 32
    %v772 = vpop.permute.xlu0 %771
    %v774 = vadd.f32 %v764, %v772
    %v775 = vtanh.pop %v774
    %777 = vrot.lane.b32.xlu0 %v775, 64
    %v778 = vpop.permute.xlu0 %777
    %v780 = vmul.f32 %v763, %v778
    %v781 = vmax.f32 %v681, %v780
    %783 = vrot.lane.b32.xlu0 %v780, 32
    %v784 = vpop.permute.xlu0 %783
    %v785 = vsel %vm53, %v784, 0
    %787 = vmatprep.subr.mxu0 0.0
    %788 = vmatpush1.msra.mxu0 0.0
    %789 = vmatprep.subr.mxu0 0.0
    %790 = vmatpush1.msra.mxu0 0.0
    %791 = vmatprep.subr.mxu0 0.0
    %792 = vmatpush1.msra.mxu0 0.0
    %793 = vmatprep.subr.mxu0 0.0
    %794 = vmatpush1.msra.mxu0 0.0
    %795 = vmatprep.subr.mxu0 0.0
    %796 = vmatpush1.msra.mxu0 0.0
    %797 = vmatprep.subr.mxu0 0.0
    %798 = vmatpush1.msra.mxu0 0.0
    %799 = vmatprep.subr.mxu0 0.0
    %800 = vmatpush1.msra.mxu0 0.0
    %801 = vmatprep.subr.mxu0 0.0
    %802 = vmatpush1.msra.mxu0 0.0
    %803 = vmatprep.subr.mxu0 0.0
    %804 = vmatpush1.msra.mxu0 0.0
    %805 = vmatprep.subr.mxu0 0.0
    %806 = vmatpush1.msra.mxu0 0.0
    %807 = vmatprep.subr.mxu0 0.0
    %808 = vmatpush1.msra.mxu0 0.0
    %809 = vmatprep.subr.mxu0 0.0
    %810 = vmatpush1.msra.mxu0 0.0
    %811 = vmatprep.subr.mxu0 0.0
    %812 = vmatpush1.msra.mxu0 %v381
    %813 = vmatprep.subr.mxu0 0.0
    %814 = vmatpush1.msra.mxu0 %v380
    %815 = vmatprep.subr.mxu0 0.0
    %816 = vmatpush1.msra.mxu0 %v379
    %817 = vmatprep.subr.mxu0 0.0
    %818 = vmatpush1.msra.mxu0 %v378
    %819 = vmatprep.subr.mxu0 0.0
    %820 = vmatpush2.msra.mxu0 0.0
    %821 = vmatprep.subr.mxu0 0.0
    %822 = vmatpush2.msra.mxu0 0.0
    %823 = vmatprep.subr.mxu0 0.0
    %824 = vmatpush2.msra.mxu0 0.0
    %825 = vmatprep.subr.mxu0 0.0
    %826 = vmatpush2.msra.mxu0 0.0
    %827 = vmatprep.subr.mxu0 0.0
    %828 = vmatpush2.msra.mxu0 0.0
    %829 = vmatprep.subr.mxu0 0.0
    %830 = vmatpush2.msra.mxu0 0.0
    %831 = vmatprep.subr.mxu0 0.0
    %832 = vmatpush2.msra.mxu0 0.0
    %833 = vmatprep.subr.mxu0 0.0
    %834 = vmatpush2.msra.mxu0 0.0
    %835 = vmatprep.subr.mxu0 0.0
    %836 = vmatpush2.msra.mxu0 0.0
    %837 = vmatprep.subr.mxu0 0.0
    %838 = vmatpush2.msra.mxu0 0.0
    %839 = vmatprep.subr.mxu0 0.0
    %840 = vmatpush2.msra.mxu0 0.0
    %841 = vmatprep.subr.mxu0 0.0
    %842 = vmatpush2.msra.mxu0 0.0
    %843 = vmatprep.subr.mxu0 0.0
    %844 = vmatpush2.msra.mxu0 0.0
    %845 = vmatprep.subr.mxu0 0.0
    %846 = vmatpush2.msra.mxu0 0.0
    %847 = vmatprep.subr.mxu0 0.0
    %848 = vmatpush2.msra.mxu0 0.0
    %849 = vmatprep.subr.mxu0 0.0
    %850 = vmatpush2.msra.mxu0 0.0
    %851 = vmatprep.mubr.f32.mxu0 0.0
    %852 = vmatmul.mubr.f32.gmra.mxu0 %v785
    %v853 = vpop.f32.mrf.mxu0
    %v854 = vadd.f32 0.0, %v853
    %v855 = vpop.f32.mrf.mxu0
    %856 = vdwg.mxu0
    %v857 = vadd.f32 %v360, %v854
    %v858 = vmul.f32 %v857, 0.5
    %v859 = vsel %vm384, %v857, %v858
    %v860 = vtanh.pop %v859
    %v861 = vmul.f32 %v860, 0.5
    %v862 = vadd.f32 %v861, 0.5
    %v863 = vsel %vm384, %v860, %v862
    %v864 = vmul.f32 %v863, %v774
    %866 = vrot.lane.b32.xlu0 %v863, 64
    %v867 = vpop.permute.xlu0 %866
    %v869 = vmul.f32 %v863, %v867
    %871 = vrot.lane.b32.xlu0 %v869, 32
    %v872 = vpop.permute.xlu0 %871
    %v874 = vadd.f32 %v864, %v872
    %v875 = vtanh.pop %v874
    %877 = vrot.lane.b32.xlu0 %v875, 64
    %v878 = vpop.permute.xlu0 %877
    %v880 = vmul.f32 %v863, %v878
    %v881 = vmax.f32 %v781, %v880
    %883 = vrot.lane.b32.xlu0 %v880, 32
    %v884 = vpop.permute.xlu0 %883
    %v885 = vsel %vm53, %v884, 0
    %887 = vmatprep.subr.mxu0 0.0
    %888 = vmatpush1.msra.mxu0 0.0
    %889 = vmatprep.subr.mxu0 0.0
    %890 = vmatpush1.msra.mxu0 0.0
    %891 = vmatprep.subr.mxu0 0.0
    %892 = vmatpush1.msra.mxu0 0.0
    %893 = vmatprep.subr.mxu0 0.0
    %894 = vmatpush1.msra.mxu0 0.0
    %895 = vmatprep.subr.mxu0 0.0
    %896 = vmatpush1.msra.mxu0 0.0
    %897 = vmatprep.subr.mxu0 0.0
    %898 = vmatpush1.msra.mxu0 0.0
    %899 = vmatprep.subr.mxu0 0.0
    %900 = vmatpush1.msra.mxu0 0.0
    %901 = vmatprep.subr.mxu0 0.0
    %902 = vmatpush1.msra.mxu0 0.0
    %903 = vmatprep.subr.mxu0 0.0
    %904 = vmatpush1.msra.mxu0 0.0
    %905 = vmatprep.subr.mxu0 0.0
    %906 = vmatpush1.msra.mxu0 0.0
    %907 = vmatprep.subr.mxu0 0.0
    %908 = vmatpush1.msra.mxu0 0.0
    %909 = vmatprep.subr.mxu0 0.0
    %910 = vmatpush1.msra.mxu0 0.0
    %911 = vmatprep.subr.mxu0 0.0
    %912 = vmatpush1.msra.mxu0 %v381
    %913 = vmatprep.subr.mxu0 0.0
    %914 = vmatpush1.msra.mxu0 %v380
    %915 = vmatprep.subr.mxu0 0.0
    %916 = vmatpush1.msra.mxu0 %v379
    %917 = vmatprep.subr.mxu0 0.0
    %918 = vmatpush1.msra.mxu0 %v378
    %919 = vmatprep.subr.mxu0 0.0
    %920 = vmatpush2.msra.mxu0 0.0
    %921 = vmatprep.subr.mxu0 0.0
    %922 = vmatpush2.msra.mxu0 0.0
    %923 = vmatprep.subr.mxu0 0.0
    %924 = vmatpush2.msra.mxu0 0.0
    %925 = vmatprep.subr.mxu0 0.0
    %926 = vmatpush2.msra.mxu0 0.0
    %927 = vmatprep.subr.mxu0 0.0
    %928 = vmatpush2.msra.mxu0 0.0
    %929 = vmatprep.subr.mxu0 0.0
    %930 = vmatpush2.msra.mxu0 0.0
    %931 = vmatprep.subr.mxu0 0.0
    %932 = vmatpush2.msra.mxu0 0.0
    %933 = vmatprep.subr.mxu0 0.0
    %934 = vmatpush2.msra.mxu0 0.0
    %935 = vmatprep.subr.mxu0 0.0
    %936 = vmatpush2.msra.mxu0 0.0
    %937 = vmatprep.subr.mxu0 0.0
    %938 = vmatpush2.msra.mxu0 0.0
    %939 = vmatprep.subr.mxu0 0.0
    %940 = vmatpush2.msra.mxu0 0.0
    %941 = vmatprep.subr.mxu0 0.0
    %942 = vmatpush2.msra.mxu0 0.0
    %943 = vmatprep.subr.mxu0 0.0
    %944 = vmatpush2.msra.mxu0 0.0
    %945 = vmatprep.subr.mxu0 0.0
    %946 = vmatpush2.msra.mxu0 0.0
    %947 = vmatprep.subr.mxu0 0.0
    %948 = vmatpush2.msra.mxu0 0.0
    %949 = vmatprep.subr.mxu0 0.0
    %950 = vmatpush2.msra.mxu0 0.0
    %951 = vmatprep.mubr.f32.mxu0 0.0
    %952 = vmatmul.mubr.f32.gmra.mxu0 %v885
    %v953 = vpop.f32.mrf.mxu0
    %v954 = vadd.f32 0.0, %v953
    %v955 = vpop.f32.mrf.mxu0
    %956 = vdwg.mxu0
    %v957 = vadd.f32 %v365, %v954
    %v958 = vmul.f32 %v957, 0.5
    %v959 = vsel %vm384, %v957, %v958
    %v960 = vtanh.pop %v959
    %v961 = vmul.f32 %v960, 0.5
    %v962 = vadd.f32 %v961, 0.5
    %v963 = vsel %vm384, %v960, %v962
    %v964 = vmul.f32 %v963, %v874
    %966 = vrot.lane.b32.xlu0 %v963, 64
    %v967 = vpop.permute.xlu0 %966
    %v969 = vmul.f32 %v963, %v967
    %971 = vrot.lane.b32.xlu0 %v969, 32
    %v972 = vpop.permute.xlu0 %971
    %v974 = vadd.f32 %v964, %v972
    %v975 = vtanh.pop %v974
    %977 = vrot.lane.b32.xlu0 %v975, 64
    %v978 = vpop.permute.xlu0 %977
    %v980 = vmul.f32 %v963, %v978
    %v981 = vmax.f32 %v881, %v980
    %983 = vrot.lane.b32.xlu0 %v980, 32
    %v984 = vpop.permute.xlu0 %983
    %v985 = vsel %vm53, %v984, 0
    %987 = vmatprep.subr.mxu0 0.0
    %988 = vmatpush1.msra.mxu0 0.0
    %989 = vmatprep.subr.mxu0 0.0
    %990 = vmatpush1.msra.mxu0 0.0
    %991 = vmatprep.subr.mxu0 0.0
    %992 = vmatpush1.msra.mxu0 0.0
    %993 = vmatprep.subr.mxu0 0.0
    %994 = vmatpush1.msra.mxu0 0.0
    %995 = vmatprep.subr.mxu0 0.0
    %996 = vmatpush1.msra.mxu0 0.0
    %997 = vmatprep.subr.mxu0 0.0
    %998 = vmatpush1.msra.mxu0 0.0
    %999 = vmatprep.subr.mxu0 0.0
    %1000 = vmatpush1.msra.mxu0 0.0
    %1001 = vmatprep.subr.mxu0 0.0
    %1002 = vmatpush1.msra.mxu0 0.0
    %1003 = vmatprep.subr.mxu0 0.0
    %1004 = vmatpush1.msra.mxu0 0.0
    %1005 = vmatprep.subr.mxu0 0.0
    %1006 = vmatpush1.msra.mxu0 0.0
    %1007 = vmatprep.subr.mxu0 0.0
    %1008 = vmatpush1.msra.mxu0 0.0
    %1009 = vmatprep.subr.mxu0 0.0
    %1010 = vmatpush1.msra.mxu0 0.0
    %1011 = vmatprep.subr.mxu0 0.0
    %1012 = vmatpush1.msra.mxu0 %v381
    %1013 = vmatprep.subr.mxu0 0.0
    %1014 = vmatpush1.msra.mxu0 %v380
    %1015 = vmatprep.subr.mxu0 0.0
    %1016 = vmatpush1.msra.mxu0 %v379
    %1017 = vmatprep.subr.mxu0 0.0
    %1018 = vmatpush1.msra.mxu0 %v378
    %1019 = vmatprep.subr.mxu0 0.0
    %1020 = vmatpush2.msra.mxu0 0.0
    %1021 = vmatprep.subr.mxu0 0.0
    %1022 = vmatpush2.msra.mxu0 0.0
    %1023 = vmatprep.subr.mxu0 0.0
    %1024 = vmatpush2.msra.mxu0 0.0
    %1025 = vmatprep.subr.mxu0 0.0
    %1026 = vmatpush2.msra.mxu0 0.0
    %1027 = vmatprep.subr.mxu0 0.0
    %1028 = vmatpush2.msra.mxu0 0.0
    %1029 = vmatprep.subr.mxu0 0.0
    %1030 = vmatpush2.msra.mxu0 0.0
    %1031 = vmatprep.subr.mxu0 0.0
    %1032 = vmatpush2.msra.mxu0 0.0
    %1033 = vmatprep.subr.mxu0 0.0
    %1034 = vmatpush2.msra.mxu0 0.0
    %1035 = vmatprep.subr.mxu0 0.0
    %1036 = vmatpush2.msra.mxu0 0.0
    %1037 = vmatprep.subr.mxu0 0.0
    %1038 = vmatpush2.msra.mxu0 0.0
    %1039 = vmatprep.subr.mxu0 0.0
    %1040 = vmatpush2.msra.mxu0 0.0
    %1041 = vmatprep.subr.mxu0 0.0
    %1042 = vmatpush2.msra.mxu0 0.0
    %1043 = vmatprep.subr.mxu0 0.0
    %1044 = vmatpush2.msra.mxu0 0.0
    %1045 = vmatprep.subr.mxu0 0.0
    %1046 = vmatpush2.msra.mxu0 0.0
    %1047 = vmatprep.subr.mxu0 0.0
    %1048 = vmatpush2.msra.mxu0 0.0
    %1049 = vmatprep.subr.mxu0 0.0
    %1050 = vmatpush2.msra.mxu0 0.0
    %1051 = vmatprep.mubr.f32.mxu0 0.0
    %1052 = vmatmul.mubr.f32.gmra.mxu0 %v985
    %v1053 = vpop.f32.mrf.mxu0
    %v1054 = vadd.f32 0.0, %v1053
    %v1055 = vpop.f32.mrf.mxu0
    %1056 = vdwg.mxu0
    %v1057 = vadd.f32 %v370, %v1054
    %v1058 = vmul.f32 %v1057, 0.5
    %v1059 = vsel %vm384, %v1057, %v1058
    %v1060 = vtanh.pop %v1059
    %v1061 = vmul.f32 %v1060, 0.5
    %v1062 = vadd.f32 %v1061, 0.5
    %v1063 = vsel %vm384, %v1060, %v1062
    %v1064 = vmul.f32 %v1063, %v974
    %1066 = vrot.lane.b32.xlu0 %v1063, 64
    %v1067 = vpop.permute.xlu0 %1066
    %v1069 = vmul.f32 %v1063, %v1067
    %1071 = vrot.lane.b32.xlu0 %v1069, 32
    %v1072 = vpop.permute.xlu0 %1071
    %v1074 = vadd.f32 %v1064, %v1072
    %v1075 = vtanh.pop %v1074
    %1077 = vrot.lane.b32.xlu0 %v1075, 64
    %v1078 = vpop.permute.xlu0 %1077
    %v1080 = vmul.f32 %v1063, %v1078
    %v1081 = vmax.f32 %v981, %v1080
    %1083 = vrot.lane.b32.xlu0 %v1080, 32
    %v1084 = vpop.permute.xlu0 %1083
    %v1085 = vsel %vm53, %v1084, 0
    %1087 = vmatprep.subr.mxu0 0.0
    %1088 = vmatpush1.msra.mxu0 0.0
    %1089 = vmatprep.subr.mxu0 0.0
    %1090 = vmatpush1.msra.mxu0 0.0
    %1091 = vmatprep.subr.mxu0 0.0
    %1092 = vmatpush1.msra.mxu0 0.0
    %1093 = vmatprep.subr.mxu0 0.0
    %1094 = vmatpush1.msra.mxu0 0.0
    %1095 = vmatprep.subr.mxu0 0.0
    %1096 = vmatpush1.msra.mxu0 0.0
    %1097 = vmatprep.subr.mxu0 0.0
    %1098 = vmatpush1.msra.mxu0 0.0
    %1099 = vmatprep.subr.mxu0 0.0
    %1100 = vmatpush1.msra.mxu0 0.0
    %1101 = vmatprep.subr.mxu0 0.0
    %1102 = vmatpush1.msra.mxu0 0.0
    %1103 = vmatprep.subr.mxu0 0.0
    %1104 = vmatpush1.msra.mxu0 0.0
    %1105 = vmatprep.subr.mxu0 0.0
    %1106 = vmatpush1.msra.mxu0 0.0
    %1107 = vmatprep.subr.mxu0 0.0
    %1108 = vmatpush1.msra.mxu0 0.0
    %1109 = vmatprep.subr.mxu0 0.0
    %1110 = vmatpush1.msra.mxu0 0.0
    %1111 = vmatprep.subr.mxu0 0.0
    %1112 = vmatpush1.msra.mxu0 %v381
    %1113 = vmatprep.subr.mxu0 0.0
    %1114 = vmatpush1.msra.mxu0 %v380
    %1115 = vmatprep.subr.mxu0 0.0
    %1116 = vmatpush1.msra.mxu0 %v379
    %1117 = vmatprep.subr.mxu0 0.0
    %1118 = vmatpush1.msra.mxu0 %v378
    %1119 = vmatprep.subr.mxu0 0.0
    %1120 = vmatpush2.msra.mxu0 0.0
    %1121 = vmatprep.subr.mxu0 0.0
    %1122 = vmatpush2.msra.mxu0 0.0
    %1123 = vmatprep.subr.mxu0 0.0
    %1124 = vmatpush2.msra.mxu0 0.0
    %1125 = vmatprep.subr.mxu0 0.0
    %1126 = vmatpush2.msra.mxu0 0.0
    %1127 = vmatprep.subr.mxu0 0.0
    %1128 = vmatpush2.msra.mxu0 0.0
    %1129 = vmatprep.subr.mxu0 0.0
    %1130 = vmatpush2.msra.mxu0 0.0
    %1131 = vmatprep.subr.mxu0 0.0
    %1132 = vmatpush2.msra.mxu0 0.0
    %1133 = vmatprep.subr.mxu0 0.0
    %1134 = vmatpush2.msra.mxu0 0.0
    %1135 = vmatprep.subr.mxu0 0.0
    %1136 = vmatpush2.msra.mxu0 0.0
    %1137 = vmatprep.subr.mxu0 0.0
    %1138 = vmatpush2.msra.mxu0 0.0
    %1139 = vmatprep.subr.mxu0 0.0
    %1140 = vmatpush2.msra.mxu0 0.0
    %1141 = vmatprep.subr.mxu0 0.0
    %1142 = vmatpush2.msra.mxu0 0.0
    %1143 = vmatprep.subr.mxu0 0.0
    %1144 = vmatpush2.msra.mxu0 0.0
    %1145 = vmatprep.subr.mxu0 0.0
    %1146 = vmatpush2.msra.mxu0 0.0
    %1147 = vmatprep.subr.mxu0 0.0
    %1148 = vmatpush2.msra.mxu0 0.0
    %1149 = vmatprep.subr.mxu0 0.0
    %1150 = vmatpush2.msra.mxu0 0.0
    %1151 = vmatprep.mubr.f32.mxu0 0.0
    %1152 = vmatmul.mubr.f32.gmra.mxu0 %v1085
    %v1153 = vpop.f32.mrf.mxu0
    %v1154 = vadd.f32 0.0, %v1153
    %v1155 = vpop.f32.mrf.mxu0
    %1156 = vdwg.mxu0
    %v1157 = vadd.f32 %v375, %v1154
    %v1158 = vmul.f32 %v1157, 0.5
    %v1159 = vsel %vm384, %v1157, %v1158
    %v1160 = vtanh.pop %v1159
    %v1161 = vmul.f32 %v1160, 0.5
    %v1162 = vadd.f32 %v1161, 0.5
    %v1163 = vsel %vm384, %v1160, %v1162
    %v1164 = vmul.f32 %v1163, %v1074
    %1166 = vrot.lane.b32.xlu0 %v1163, 64
    %v1167 = vpop.permute.xlu0 %1166
    %v1169 = vmul.f32 %v1163, %v1167
    %1171 = vrot.lane.b32.xlu0 %v1169, 32
    %v1172 = vpop.permute.xlu0 %1171
    %v1174 = vadd.f32 %v1164, %v1172
    %v1175 = vtanh.pop %v1174
    %1177 = vrot.lane.b32.xlu0 %v1175, 64
    %v1178 = vpop.permute.xlu0 %1177
    %v1180 = vmul.f32 %v1163, %v1178
    %v1181 = vmax.f32 %v1081, %v1180
    %v1182 = vld [vmem:[%s5] sm:$0xff]
    %v1183 = vld [vmem:[%s5 + $0x8] sm:$0xff]
    %v1184 = vld [vmem:[%s5 + $0x10] sm:$0xff]
    %v1185 = vld [vmem:[%s5 + $0x18] sm:$0xff]
    %v1186 = vld [vmem:[%s6] sm:$0x1]
    %v1188 = vlaneseq
    %v1189 = vshrl.u32 %v1188, 7
    %v1190 = vsub.s32 0, %v1189
    %v1191 = vrot.slane %v1186, %v1190
    %1194 = vrot.lane.b32.xlu0 %v1181, 32
    %v1195 = vpop.permute.xlu0 %1194
    %v1196 = vsel %vm53, %v1195, 0
    %1198 = vmatprep.subr.mxu0 0.0
    %1199 = vmatpush1.msra.mxu0 0.0
    %1200 = vmatprep.subr.mxu0 0.0
    %1201 = vmatpush1.msra.mxu0 0.0
    %1202 = vmatprep.subr.mxu0 0.0
    %1203 = vmatpush1.msra.mxu0 0.0
    %1204 = vmatprep.subr.mxu0 0.0
    %1205 = vmatpush1.msra.mxu0 0.0
    %1206 = vmatprep.subr.mxu0 0.0
    %1207 = vmatpush1.msra.mxu0 0.0
    %1208 = vmatprep.subr.mxu0 0.0
    %1209 = vmatpush1.msra.mxu0 0.0
    %1210 = vmatprep.subr.mxu0 0.0
    %1211 = vmatpush1.msra.mxu0 0.0
    %1212 = vmatprep.subr.mxu0 0.0
    %1213 = vmatpush1.msra.mxu0 0.0
    %1214 = vmatprep.subr.mxu0 0.0
    %1215 = vmatpush1.msra.mxu0 0.0
    %1216 = vmatprep.subr.mxu0 0.0
    %1217 = vmatpush1.msra.mxu0 0.0
    %1218 = vmatprep.subr.mxu0 0.0
    %1219 = vmatpush1.msra.mxu0 0.0
    %1220 = vmatprep.subr.mxu0 0.0
    %1221 = vmatpush1.msra.mxu0 0.0
    %1222 = vmatprep.subr.mxu0 0.0
    %1223 = vmatpush1.msra.mxu0 %v1185
    %1224 = vmatprep.subr.mxu0 0.0
    %1225 = vmatpush1.msra.mxu0 %v1184
    %1226 = vmatprep.subr.mxu0 0.0
    %1227 = vmatpush1.msra.mxu0 %v1183
    %1228 = vmatprep.subr.mxu0 0.0
    %1229 = vmatpush1.msra.mxu0 %v1182
    %1230 = vmatprep.subr.mxu0 0.0
    %1231 = vmatpush2.msra.mxu0 0.0
    %1232 = vmatprep.subr.mxu0 0.0
    %1233 = vmatpush2.msra.mxu0 0.0
    %1234 = vmatprep.subr.mxu0 0.0
    %1235 = vmatpush2.msra.mxu0 0.0
    %1236 = vmatprep.subr.mxu0 0.0
    %1237 = vmatpush2.msra.mxu0 0.0
    %1238 = vmatprep.subr.mxu0 0.0
    %1239 = vmatpush2.msra.mxu0 0.0
    %1240 = vmatprep.subr.mxu0 0.0
    %1241 = vmatpush2.msra.mxu0 0.0
    %1242 = vmatprep.subr.mxu0 0.0
    %1243 = vmatpush2.msra.mxu0 0.0
    %1244 = vmatprep.subr.mxu0 0.0
    %1245 = vmatpush2.msra.mxu0 0.0
    %1246 = vmatprep.subr.mxu0 0.0
    %1247 = vmatpush2.msra.mxu0 0.0
    %1248 = vmatprep.subr.mxu0 0.0
    %1249 = vmatpush2.msra.mxu0 0.0
    %1250 = vmatprep.subr.mxu0 0.0
    %1251 = vmatpush2.msra.mxu0 0.0
    %1252 = vmatprep.subr.mxu0 0.0
    %1253 = vmatpush2.msra.mxu0 0.0
    %1254 = vmatprep.subr.mxu0 0.0
    %1255 = vmatpush2.msra.mxu0 0.0
    %1256 = vmatprep.subr.mxu0 0.0
    %1257 = vmatpush2.msra.mxu0 0.0
    %1258 = vmatprep.subr.mxu0 0.0
    %1259 = vmatpush2.msra.mxu0 0.0
    %1260 = vmatprep.subr.mxu0 0.0
    %1261 = vmatpush2.msra.mxu0 0.0
    %1262 = vmatprep.mubr.f32.mxu0 0.0
    %1263 = vmatmul.mubr.f32.gmra.mxu0 %v1196
    %v1264 = vpop.f32.mrf.mxu0
    %v1265 = vadd.f32 %v1191, %v1264
    %v1266 = vpop.f32.mrf.mxu0
    %1267 = vdwg.mxu0
    %v1268 = vmax.f32 %v1265, 0.0
    %v1269 = vld [vmem:[%s7] sm:$0xff]
    %v1270 = vld [vmem:[%s7 + $0x8] sm:$0xff]
    %v1271 = vld [vmem:[%s7 + $0x10] sm:$0xff]
    %v1272 = vld [vmem:[%s7 + $0x18] sm:$0xff]
    %v1273 = vld [vmem:[%s8] sm:$0x1]
    %v1275 = vlaneseq
    %v1276 = vshrl.u32 %v1275, 7
    %v1277 = vsub.s32 0, %v1276
    %v1278 = vrot.slane %v1273, %v1277
    %v1281 = vsel %vm53, %v1268, 0
    %1283 = vmatprep.subr.mxu0 0.0
    %1284 = vmatpush1.msra.mxu0 0.0
    %1285 = vmatprep.subr.mxu0 0.0
    %1286 = vmatpush1.msra.mxu0 0.0
    %1287 = vmatprep.subr.mxu0 0.0
    %1288 = vmatpush1.msra.mxu0 0.0
    %1289 = vmatprep.subr.mxu0 0.0
    %1290 = vmatpush1.msra.mxu0 0.0
    %1291 = vmatprep.subr.mxu0 0.0
    %1292 = vmatpush1.msra.mxu0 0.0
    %1293 = vmatprep.subr.mxu0 0.0
    %1294 = vmatpush1.msra.mxu0 0.0
    %1295 = vmatprep.subr.mxu0 0.0
    %1296 = vmatpush1.msra.mxu0 0.0
    %1297 = vmatprep.subr.mxu0 0.0
    %1298 = vmatpush1.msra.mxu0 0.0
    %1299 = vmatprep.subr.mxu0 0.0
    %1300 = vmatpush1.msra.mxu0 0.0
    %1301 = vmatprep.subr.mxu0 0.0
    %1302 = vmatpush1.msra.mxu0 0.0
    %1303 = vmatprep.subr.mxu0 0.0
    %1304 = vmatpush1.msra.mxu0 0.0
    %1305 = vmatprep.subr.mxu0 0.0
    %1306 = vmatpush1.msra.mxu0 0.0
    %1307 = vmatprep.subr.mxu0 0.0
    %1308 = vmatpush1.msra.mxu0 %v1272
    %1309 = vmatprep.subr.mxu0 0.0
    %1310 = vmatpush1.msra.mxu0 %v1271
    %1311 = vmatprep.subr.mxu0 0.0
    %1312 = vmatpush1.msra.mxu0 %v1270
    %1313 = vmatprep.subr.mxu0 0.0
    %1314 = vmatpush1.msra.mxu0 %v1269
    %1315 = vmatprep.subr.mxu0 0.0
    %1316 = vmatpush2.msra.mxu0 0.0
    %1317 = vmatprep.subr.mxu0 0.0
    %1318 = vmatpush2.msra.mxu0 0.0
    %1319 = vmatprep.subr.mxu0 0.0
    %1320 = vmatpush2.msra.mxu0 0.0
    %1321 = vmatprep.subr.mxu0 0.0
    %1322 = vmatpush2.msra.mxu0 0.0
    %1323 = vmatprep.subr.mxu0 0.0
    %1324 = vmatpush2.msra.mxu0 0.0
    %1325 = vmatprep.subr.mxu0 0.0
    %1326 = vmatpush2.msra.mxu0 0.0
    %1327 = vmatprep.subr.mxu0 0.0
    %1328 = vmatpush2.msra.mxu0 0.0
    %1329 = vmatprep.subr.mxu0 0.0
    %1330 = vmatpush2.msra.mxu0 0.0
    %1331 = vmatprep.subr.mxu0 0.0
    %1332 = vmatpush2.msra.mxu0 0.0
    %1333 = vmatprep.subr.mxu0 0.0
    %1334 = vmatpush2.msra.mxu0 0.0
    %1335 = vmatprep.subr.mxu0 0.0
    %1336 = vmatpush2.msra.mxu0 0.0
    %1337 = vmatprep.subr.mxu0 0.0
    %1338 = vmatpush2.msra.mxu0 0.0
    %1339 = vmatprep.subr.mxu0 0.0
    %1340 = vmatpush2.msra.mxu0 0.0
    %1341 = vmatprep.subr.mxu0 0.0
    %1342 = vmatpush2.msra.mxu0 0.0
    %1343 = vmatprep.subr.mxu0 0.0
    %1344 = vmatpush2.msra.mxu0 0.0
    %1345 = vmatprep.subr.mxu0 0.0
    %1346 = vmatpush2.msra.mxu0 0.0
    %1347 = vmatprep.mubr.f32.mxu0 0.0
    %1348 = vmatmul.mubr.f32.gmra.mxu0 %v1281
    %v1349 = vpop.f32.mrf.mxu0
    %v1350 = vadd.f32 %v1278, %v1349
    %v1351 = vpop.f32.mrf.mxu0
    %1352 = vdwg.mxu0
    %v1353 = vld [vmem:[%s9] sm:$0x3]
    %v1354 = vmax.f32 %v1350, 0.0
    %v1355 = vmul.f32 %v1350, %v1353
    %v1356 = vsub.f32 %v1354, %v1355
    %v1357 = vand.u32 2147483647, %v1350
    %v1358 = vsub.f32 0.0, %v1357
    %v1359 = vmul.f32 %v1358, 1.442695
    %v1360 = vpow.pop %v1359
    %v1361 = vadd.f32 %v1360, 1.0
    %v1362 = vlog2.pop %v1361
    %v1363 = vmul.f32 %v1362, 0.6931472
    %v1364 = vmul.f32 -0.5, %v1360
    %v1365 = vadd.f32 %v1364, 1.0
    %v1366 = vmul.f32 %v1365, %v1360
    %v1367 = vand.u32 2147483647, %v1360
    %vm1368 = vcmp.lt.f32.partialorder %v1367, 0.0004427343
    %v1369 = vsel %vm1368, %v1366, %v1363
    %v1370 = vadd.f32 %v1356, %v1369
    %vm1371 = vcmask 123904
    %v1372 = vsel %vm1371, %v1370, 0.0
    %1373 = vadd.xlane.f32.xlu0 %v1372
    %v1374 = vpop.xlane.xlu0 %1373
    %v1375 = vrot.slane %v1374, 4
    %v1376 = vadd.f32 %v1374, %v1375
    %v1377 = vrot.slane %v1376, 2
    %v1378 = vadd.f32 %v1376, %v1377
    %v1379 = vrot.slane %v1378, 1
    %v1380 = vadd.f32 %v1378, %v1379
    %s1381 = vtos %v1380
    %v1382 = vrcp.pop 32.0
    %s1383 = vtos %v1382
    %s1384 = smul.f32 %s1381, %s1383
    %s1385 = scalar_lea.smem [#allocation2], 0
    %1386 = sst [smem:[%s1385]] %s1384
    %v1387 = vxor.u32 %v1350, 2147483648
    %v1388 = vmul.f32 %v1387, 1.442695
    %v1389 = vpow.pop %v1388
    %v1390 = vadd.f32 %v1389, 1.0
    %v1391 = vrcp.pop %v1390
    %v1392 = vmul.f32 1.0, %v1391
    %v1393 = vsel %vm1371, %v1392, -inf
    %1394 = vmax.xlane.f32.xlu0 %v1393
    %v1395 = vpop.xlane.xlu0 %1394
    %v1396 = vsub.f32 %v1392, %v1395
    %v1397 = vmul.f32 %v1396, 1.442695
    %v1398 = vpow.pop %v1397
    %v1399 = vsel %vm1371, %v1398, 0.0
    %1400 = vadd.xlane.f32.xlu0 %v1399
    %v1401 = vpop.xlane.xlu0 %1400
    %v1402 = vrcp.pop %v1401
    %v1403 = vmul.f32 %v1398, %v1402
    %vm1404 = vcmp.eq.f32.partialorder %v1392, %v1395
    %v1405 = vsel %vm1404, %v184, 16
    %v1406 = vsel %vm1371, %v1405, 2147483647
    %v1407 = vand.u32 %v1406, 65535
    %v1408 = vshra.s32 %v1406, 16
    %v1409 = vcvt.s32.f32 %v1407
    %v1410 = vcvt.s32.f32 %v1408
    %1411 = vmin.xlane.f32.xlu0 %v1410
    %v1412 = vpop.xlane.xlu0 %1411
    %vm1413 = vcmp.eq.f32.partialorder %v1410, %v1412
    %v1414 = vsel %vm1413, %v1409, inf
    %1415 = vmin.xlane.f32.xlu0 %v1414
    %v1416 = vpop.xlane.xlu0 %1415
    %v1417 = vcvt.f32.s32 %v1416
    %v1418 = vcvt.f32.s32 %v1412
    %v1419 = vshll.u32 %v1418, 16
    %v1420 = vadd.s32 %v1419, %v1417
    %vm1421 = vcmp.eq.s32.totalorder %v184, %v1420
    %v1422 = vsel %vm1421, 1.0, 0.0
    %v1423 = vsel %vm1421, -inf, %v1392
    %v1424 = vsel %vm1371, %v1423, -inf
    %1425 = vmax.xlane.f32.xlu0 %v1424
    %v1426 = vpop.xlane.xlu0 %1425
    %vm1427 = vcmp.eq.f32.partialorder %v1423, %v1426
    %v1428 = vsel %vm1427, %v184, 16
    %v1429 = vsel %vm1371, %v1428, 2147483647
    %v1430 = vand.u32 %v1429, 65535
    %v1431 = vshra.s32 %v1429, 16
    %v1432 = vcvt.s32.f32 %v1430
    %v1433 = vcvt.s32.f32 %v1431
    %1434 = vmin.xlane.f32.xlu0 %v1433
    %v1435 = vpop.xlane.xlu0 %1434
    %vm1436 = vcmp.eq.f32.partialorder %v1433, %v1435
    %v1437 = vsel %vm1436, %v1432, inf
    %1438 = vmin.xlane.f32.xlu0 %v1437
    %v1439 = vpop.xlane.xlu0 %1438
    %v1440 = vcvt.f32.s32 %v1439
    %v1441 = vcvt.f32.s32 %v1435
    %v1442 = vshll.u32 %v1441, 16
    %v1443 = vadd.s32 %v1442, %v1440
    %vm1444 = vcmp.eq.s32.totalorder %v184, %v1443
    %v1445 = vsel %vm1444, 1.0, %v1422
    %v1446 = vsel %vm1444, -inf, %v1423
    %v1447 = vsel %vm1371, %v1446, -inf
    %1448 = vmax.xlane.f32.xlu0 %v1447
    %v1449 = vpop.xlane.xlu0 %1448
    %vm1450 = vcmp.eq.f32.partialorder %v1446, %v1449
    %v1451 = vsel %vm1450, %v184, 16
    %v1452 = vsel %vm1371, %v1451, 2147483647
    %v1453 = vand.u32 %v1452, 65535
    %v1454 = vshra.s32 %v1452, 16
    %v1455 = vcvt.s32.f32 %v1453
    %v1456 = vcvt.s32.f32 %v1454
    %1457 = vmin.xlane.f32.xlu0 %v1456
    %v1458 = vpop.xlane.xlu0 %1457
    %vm1459 = vcmp.eq.f32.partialorder %v1456, %v1458
    %v1460 = vsel %vm1459, %v1455, inf
    %1461 = vmin.xlane.f32.xlu0 %v1460
    %v1462 = vpop.xlane.xlu0 %1461
    %v1463 = vcvt.f32.s32 %v1462
    %v1464 = vcvt.f32.s32 %v1458
    %v1465 = vshll.u32 %v1464, 16
    %v1466 = vadd.s32 %v1465, %v1463
    %vm1467 = vcmp.eq.s32.totalorder %v184, %v1466
    %v1468 = vsel %vm1467, 1.0, %v1445
    %v1469 = vmul.f32 %v1353, %v1403
    %v1470 = vsub.f32 1.0, %v1468
    %v1471 = vmul.f32 %v1469, %v1470
    %v1472 = vsel %vm1371, %v1471, 0.0
    %1473 = vadd.xlane.f32.xlu0 %v1472
    %v1474 = vpop.xlane.xlu0 %1473
    %vm1475 = vcmask 1024
    %v1476 = vsel %vm1475, %v1474, 0.0
    %1477 = vadd.xlane.f32.xlu0 %v1476
    %v1478 = vpop.xlane.xlu0 %1477
    %v1479 = vrot.slane %v1478, 4
    %v1480 = vadd.f32 %v1478, %v1479
    %v1481 = vrot.slane %v1480, 2
    %v1482 = vadd.f32 %v1480, %v1481
    %v1483 = vrot.slane %v1482, 1
    %v1484 = vadd.f32 %v1482, %v1483
    %s1485 = vtos %v1484
    %v1486 = vrcp.pop 2.0
    %s1487 = vtos %v1486
    %s1488 = smul.f32 %s1485, %s1487
    %s1489 = scalar_lea.smem [#allocation5], 0
    %1490 = sst [smem:[%s1489]] %s1488
    %vm1491 = vcmp.gt.f32.partialorder %v1392, 0.3
    %v1492 = vsel %vm1491, 1, 0
    %1493 = vst.msk [vmem:[#allocation7] sm:$0x3] %vm1371, %v1492
    // Predicated region
    $region42: #{law_model_forward.1} parent=1 // pred_check
      _
    $region43: #{law_model_forward.1} parent=1 // pred_check_branch
      %1495 = sbr.rel (0) target = $region45
    $region44: #{law_model_forward.1} parent=1 // pred_region
      %s1497 = ssub.s32 16, 16
      %1498 = vsyncadd [#allocation4], %s1497
      %1501 = dma.smem_to_hbm [#allocation2], 16, %s10, [#allocation4]
    $region45: #{law_model_forward.1} parent=1 // pred_fallthru
      _
    // Predicated region
    $region46: #{law_model_forward.1} parent=1 // pred_check
      _
    $region47: #{law_model_forward.1} parent=1 // pred_check_branch
      %1503 = sbr.rel (0) target = $region49
    $region48: #{law_model_forward.1} parent=1 // pred_region
      %s1505 = ssub.s32 16, 16
      %1506 = vsyncadd [#allocation6], %s1505
      %1509 = dma.smem_to_hbm [#allocation5], 16, %s11, [#allocation6]
    $region49: #{law_model_forward.1} parent=1 // pred_fallthru
      _
    // Predicated region
    $region50: #{law_model_forward.1} parent=1 // pred_check
      _
    $region51: #{law_model_forward.1} parent=1 // pred_check_branch
      %1511 = sbr.rel (0) target = $region53
    $region52: #{law_model_forward.1} parent=1 // pred_region
      %s1513 = ssub.s32 32, 32
      %1514 = vsyncadd [#allocation3], %s1513
      %s1516 = sshll.u32 [#allocation7], 4
      %s1517 = int_to_ptr.vmem [resolvable:$true] %s1516
      %1519 = dma.vmem_to_hbm [thread:$0]  %s1517, 32, %s12, [#allocation3]
    $region53: #{law_model_forward.1} parent=1 // pred_fallthru
      _
    // Predicated region
    $region54: #{law_model_forward.1} parent=1 // pred_check
      _
    $region55: #{law_model_forward.1} parent=1 // pred_check_branch
      %1521 = sbr.rel (0) target = $region57
    $region56: #{law_model_forward.1} parent=1 // pred_region
      %1522 = dma.done [#allocation4], 16
    $region57: #{law_model_forward.1} parent=1 // pred_fallthru
      _
    // Predicated region
    $region58: #{law_model_forward.1} parent=1 // pred_check
      _
    $region59: #{law_model_forward.1} parent=1 // pred_check_branch
      %1524 = sbr.rel (0) target = $region61
    $region60: #{law_model_forward.1} parent=1 // pred_region
      %1525 = dma.done [#allocation6], 16
    $region61: #{law_model_forward.1} parent=1 // pred_fallthru
      _
    // Predicated region
    $region62: #{law_model_forward.1} parent=1 // pred_check
      _
    $region63: #{law_model_forward.1} parent=1 // pred_check_branch
      %1527 = sbr.rel (0) target = $region65
    $region64: #{law_model_forward.1} parent=1 // pred_region
      %1528 = dma.done [#allocation3], 32
    $region65: #{law_model_forward.1} parent=1 // pred_fallthru
      _
    %1529 = sfence
    %1530 = vsyncpa [#allocation3], 1
    %1531 = vsyncpa [#allocation4], 1
    %1532 = vsyncpa [#allocation6], 1

</llo_original>
